<compile_context>
chip_gen: v7x
topology: tpu7x:2x2x1
jax: 0.10.0
libtpu: 0.0.40
codegen_flags: <defaults>
</compile_context>

<pallas_src>
import functools

import jax
import jax.numpy as jnp
from jax import lax
from jax.experimental import pallas as pl
from jax.experimental.pallas import tpu as pltpu

EPS = 1e-5


def _double_conv_kernel(x_ref, w1_ref, w2_ref, b1_ref, b2_ref,
                        g1_ref, be1_ref, g2_ref, be2_ref,
                        pool_ref, poolt_ref, y_ref, *, H):
    """Fully fused double_conv.

    x_ref   : (N*H, W*Cin)        bf16   input rows, channels on lanes
    w1_ref  : (3*W*Cin, W*Cout)   bf16   conv1 block-Toeplitz weights
    w2_ref  : (3*W*Cout, W*Cout)  bf16   conv2 block-Toeplitz weights
    b*_ref  : (1, W*Cout)         f32    conv biases tiled across W
    g*/be*  : (1, Cout)           f32    BN gamma / beta
    pool_ref: (W*Cout, Cout)      f32    0/1 lane-group -> channel reducer
    poolt   : (Cout, W*Cout)      f32    channel -> lane-group broadcaster
    y_ref   : (N*H, W*Cout)       f32    output rows (lane dense)
    """
    M2, WCin = x_ref.shape
    WCout = y_ref.shape[1]
    Cout = pool_ref.shape[1]
    W = WCout // Cout
    N = M2 // H
    inv_n = 1.0 / float(N * H * W)

    # Row masks for the H-direction halo (h == row % H within each image).
    row = lax.broadcasted_iota(jnp.int32, (M2, 1), 0)
    h_idx = row % H
    is_top = h_idx == 0            # dh = -1 tap is zero padding
    is_bot = h_idx == H - 1        # dh = +1 tap is zero padding

    def halo(a):
        # a: (M2, L) -> (M2, 3L) = [row above | row | row below], zero at edges.
        zero = jnp.zeros_like(a[0:1, :])
        prev = jnp.concatenate([zero, a[:-1, :]], axis=0)   # a[r-1]
        nxt = jnp.concatenate([a[1:, :], zero], axis=0)     # a[r+1]
        prev = jnp.where(is_top, jnp.zeros_like(prev), prev)
        nxt = jnp.where(is_bot, jnp.zeros_like(nxt), nxt)
        return jnp.concatenate([prev, a, nxt], axis=1)

    def bn_relu(acc, gamma, beta):
        # One-pass batch statistics: E[x], E[x^2] over all N*H*W positions.
        s = jnp.sum(acc, axis=0, keepdims=True)             # (1, W*Cout)
        sq = jnp.sum(acc * acc, axis=0, keepdims=True)      # (1, W*Cout)
        ch = jnp.dot(jnp.concatenate([s, sq], axis=0), pool_ref[...],
                     preferred_element_type=jnp.float32)    # (2, Cout)
        mean = ch[0:1, :] * inv_n
        var = ch[1:2, :] * inv_n - mean * mean              # biased variance
        scale = gamma * lax.rsqrt(var + EPS)                # (1, Cout), EUP rsqrt
        shift = beta - mean * scale
        ssb = jnp.dot(jnp.concatenate([scale, shift], axis=0), poolt_ref[...],
                      preferred_element_type=jnp.float32)   # (2, W*Cout)
        return jnp.maximum(acc * ssb[0:1, :] + ssb[1:2, :], 0.0)

    # ---- conv1: single MXU matmul, K = 3*W*Cin ----
    patches1 = halo(x_ref[...])                              # (M2, 3*W*Cin) bf16
    acc1 = jnp.dot(patches1, w1_ref[...],
                   preferred_element_type=jnp.float32) + b1_ref[...]
    h1 = bn_relu(acc1, g1_ref[...], be1_ref[...])            # (M2, W*Cout) f32

    # ---- conv2: single MXU matmul, K = 3*W*Cout ----
    patches2 = halo(h1.astype(w2_ref.dtype))                 # (M2, 3*W*Cout) bf16
    acc2 = jnp.dot(patches2, w2_ref[...],
                   preferred_element_type=jnp.float32) + b2_ref[...]
    y_ref[...] = bn_relu(acc2, g2_ref[...], be2_ref[...])


def _toeplitz_weight(w_taps, W):
    """(9, Cin, Cout) tap-major 3x3 weights -> (3*W*Cin, W*Cout) block-Toeplitz.

    Row index = kh*W*Cin + w_in*Cin + ci, col index = w_out*Cout + co; entries
    outside |w_in - w_out| <= 1 are zero, which implements the width padding.
    """
    Cin, Cout = w_taps.shape[1], w_taps.shape[2]
    w = w_taps.reshape(3, 3, Cin, Cout)
    w_in = jnp.arange(W)[:, None]
    w_out = jnp.arange(W)[None, :]
    kw = w_in - w_out + 1                                    # (W, W)
    valid = ((kw >= 0) & (kw <= 2)).astype(w.dtype)
    kw_c = jnp.clip(kw, 0, 2)
    blocks = w[:, kw_c, :, :] * valid[None, :, :, None, None]  # (3, W, W, Cin, Cout)
    blocks = jnp.transpose(blocks, (0, 1, 3, 2, 4))          # (3, W_in, Cin, W_out, Cout)
    return blocks.reshape(3 * W * Cin, W * Cout)


@jax.jit
def double_conv_pallas(x_nchw, w1, b1, g1, be1, w2, b2, g2, be2):
    """x_nchw: (N, Cin, H, W) f32. Returns (N, Cout, H, W) f32."""
    N, Cin, H, W = x_nchw.shape
    Cout = w1.shape[-1]
    M2, WCin, WCout = N * H, W * Cin, W * Cout

    # NCHW -> lane-dense (N*H, W*Cin); matmul operands in bf16 (no jnp.pad).
    x2d = (jnp.transpose(x_nchw, (0, 2, 3, 1))
           .reshape(M2, WCin).astype(jnp.bfloat16))
    w1m = _toeplitz_weight(w1.astype(jnp.float32), W).astype(jnp.bfloat16)
    w2m = _toeplitz_weight(w2.astype(jnp.float32), W).astype(jnp.bfloat16)
    b1r = jnp.tile(b1.reshape(1, Cout).astype(jnp.float32), (1, W))
    b2r = jnp.tile(b2.reshape(1, Cout).astype(jnp.float32), (1, W))
    eye = jnp.eye(Cout, dtype=jnp.float32)
    pool = jnp.tile(eye, (W, 1))       # (W*Cout, Cout)
    poolt = jnp.tile(eye, (1, W))      # (Cout, W*Cout)

    vmem = pl.BlockSpec(memory_space=pltpu.MemorySpace.VMEM)
    flops = 2 * M2 * (3 * WCin) * WCout + 2 * M2 * (3 * WCout) * WCout
    bytes_accessed = (2 * (M2 * WCin + 3 * WCin * WCout + 3 * WCout * WCout)
                      + 4 * (2 * WCout + 4 * Cout + 2 * W * Cout * Cout + M2 * WCout))

    y2d = pl.pallas_call(
        functools.partial(_double_conv_kernel, H=H),
        out_shape=jax.ShapeDtypeStruct((M2, WCout), jnp.float32),
        in_specs=[vmem] * 11,
        out_specs=vmem,
        compiler_params=pltpu.CompilerParams(vmem_limit_bytes=32 * 1024 * 1024),
        cost_estimate=pl.CostEstimate(flops=flops, transcendentals=2 * Cout,
                                      bytes_accessed=bytes_accessed),
    )(x2d, w1m, w2m, b1r, b2r,
      g1.reshape(1, Cout).astype(jnp.float32),
      be1.reshape(1, Cout).astype(jnp.float32),
      g2.reshape(1, Cout).astype(jnp.float32),
      be2.reshape(1, Cout).astype(jnp.float32),
      pool, poolt)

    return jnp.transpose(y2d.reshape(N, H, W, Cout), (0, 3, 1, 2))


def _reference(x_nchw, w1, b1, g1, be1, w2, b2, g2, be2,
               matmul_dtype=jnp.float32):
    """Pure-JAX reference (same semantics). matmul_dtype=bfloat16 mimics the
    kernel's bf16 MXU operands (with f32 accumulation) for a tight check."""
    x = jnp.transpose(x_nchw, (0, 2, 3, 1)).astype(jnp.float32)

    def conv(h, w_taps, b):
        Ci, Co = w_taps.shape[1], w_taps.shape[2]
        w_hwio = (w_taps.reshape(3, 3, Ci, Co)
                  .astype(matmul_dtype).astype(jnp.float32))
        h = h.astype(matmul_dtype).astype(jnp.float32)
        out = lax.conv_general_dilated(
            h, w_hwio, window_strides=(1, 1), padding="SAME",
            dimension_numbers=("NHWC", "HWIO", "NHWC"))
        return out + b.reshape(1, 1, 1, Co)

    def bn_relu(h, g, be):
        mean = jnp.mean(h, axis=(0, 1, 2), keepdims=True)
        var = jnp.mean((h - mean) ** 2, axis=(0, 1, 2), keepdims=True)
        h = ((h - mean) * lax.rsqrt(var + EPS) * g.reshape(1, 1, 1, -1)
             + be.reshape(1, 1, 1, -1))
        return jnp.maximum(h, 0.0)

    h = bn_relu(conv(x, w1, b1), g1, be1)
    h = bn_relu(conv(h, w2, b2), g2, be2)
    return jnp.transpose(h, (0, 3, 1, 2))


if __name__ == "__main__":
    # Small shapes consistent with the module: batch=2, in_ch=4, out_ch=8, 16x16.
    N, Cin, Cout, H, W = 2, 4, 8, 16, 16

    key = jax.random.PRNGKey(0)
    ks = jax.random.split(key, 9)

    x = jax.random.normal(ks[0], (N, Cin, H, W), jnp.float32)

    # Deterministic synthetic parameters (shapes from nn.Conv2d / nn.BatchNorm2d).
    w1 = 0.1 * jax.random.normal(ks[1], (9, Cin, Cout), jnp.float32)    # conv1 weight (kh*3+kw, Cin, Cout)
    b1 = 0.1 * jax.random.normal(ks[2], (1, Cout), jnp.float32)         # conv1 bias
    g1 = 1.0 + 0.1 * jax.random.normal(ks[3], (1, Cout), jnp.float32)   # BN1 gamma
    be1 = 0.1 * jax.random.normal(ks[4], (1, Cout), jnp.float32)        # BN1 beta
    w2 = 0.1 * jax.random.normal(ks[5], (9, Cout, Cout), jnp.float32)   # conv2 weight
    b2 = 0.1 * jax.random.normal(ks[6], (1, Cout), jnp.float32)         # conv2 bias
    g2 = 1.0 + 0.1 * jax.random.normal(ks[7], (1, Cout), jnp.float32)   # BN2 gamma
    be2 = 0.1 * jax.random.normal(ks[8], (1, Cout), jnp.float32)        # BN2 beta

    y = double_conv_pallas(x, w1, b1, g1, be1, w2, b2, g2, be2)
    jax.block_until_ready(y)
    assert y.shape == (N, Cout, H, W), y.shape

    # Tight check vs a reference that quantizes matmul operands to bf16 like the MXU path.
    y_ref_bf16 = _reference(x, w1, b1, g1, be1, w2, b2, g2, be2,
                            matmul_dtype=jnp.bfloat16)
    assert jnp.allclose(y, y_ref_bf16, atol=2e-3, rtol=2e-3), \
        float(jnp.max(jnp.abs(y - y_ref_bf16)))

    # Sanity check vs the pure f32 reference (bf16 operand quantization only).
    y_ref_f32 = _reference(x, w1, b1, g1, be1, w2, b2, g2, be2)
    assert jnp.allclose(y, y_ref_f32, atol=5e-2, rtol=5e-2), \
        float(jnp.max(jnp.abs(y - y_ref_f32)))

    print("KERNEL_OK")
</pallas_src>

<mosaic_0001>
module attributes {stable_mosaic.version = 11 : i64} {
  func.func @_double_conv_kernel(%arg0: memref<32x64xbf16, #tpu.memory_space<vmem>>, %arg1: memref<192x128xbf16, #tpu.memory_space<vmem>>, %arg2: memref<384x128xbf16, #tpu.memory_space<vmem>>, %arg3: memref<1x128xf32, #tpu.memory_space<vmem>>, %arg4: memref<1x128xf32, #tpu.memory_space<vmem>>, %arg5: memref<1x8xf32, #tpu.memory_space<vmem>>, %arg6: memref<1x8xf32, #tpu.memory_space<vmem>>, %arg7: memref<1x8xf32, #tpu.memory_space<vmem>>, %arg8: memref<1x8xf32, #tpu.memory_space<vmem>>, %arg9: memref<128x8xf32, #tpu.memory_space<vmem>>, %arg10: memref<8x128xf32, #tpu.memory_space<vmem>>, %arg11: memref<32x128xf32, #tpu.memory_space<vmem>>) attributes {dimension_semantics = [], scalar_prefetch = 0 : i64, scratch_operands = 0 : i64, tpu.core_type = #tpu.core_type<tc>} {
    %0 = tpu.iota {dimensions = array<i32: 0>} : vector<32x1xi32>
    %c16_i32 = arith.constant 16 : i32
    %c0_i32 = arith.constant 0 : i32
    %1 = arith.cmpi eq, %c16_i32, %c0_i32 : i32
    %c1_i32 = arith.constant 1 : i32
    %2 = arith.select %1, %c1_i32, %c16_i32 : i32
    %3 = vector.broadcast %2 : i32 to vector<32x1xi32>
    %4 = arith.remsi %0, %3 : vector<32x1xi32>
    %c0_i32_0 = arith.constant 0 : i32
    %5 = vector.broadcast %c0_i32_0 : i32 to vector<32x1xi32>
    %6 = arith.cmpi ne, %4, %5 : vector<32x1xi32>
    %c0_i32_1 = arith.constant 0 : i32
    %7 = vector.broadcast %c0_i32_1 : i32 to vector<32x1xi32>
    %8 = arith.cmpi slt, %4, %7 : vector<32x1xi32>
    %c0_i32_2 = arith.constant 0 : i32
    %9 = arith.cmpi slt, %2, %c0_i32_2 : i32
    %10 = vector.broadcast %9 : i1 to vector<32x1xi1>
    %11 = vector.broadcast %10 : vector<32x1xi1> to vector<32x1xi1>
    %12 = arith.xori %8, %11 : vector<32x1xi1>
    %13 = arith.andi %12, %6 : vector<32x1xi1>
    %14 = vector.broadcast %2 : i32 to vector<32x1xi32>
    %15 = arith.addi %4, %14 : vector<32x1xi32>
    %16 = arith.select %13, %15, %4 : vector<32x1xi1>, vector<32x1xi32>
    %c0_i32_3 = arith.constant 0 : i32
    %17 = vector.broadcast %c0_i32_3 : i32 to vector<32x1xi32>
    %18 = arith.cmpi eq, %16, %17 : vector<32x1xi32>
    %c15_i32 = arith.constant 15 : i32
    %19 = vector.broadcast %c15_i32 : i32 to vector<32x1xi32>
    %20 = arith.cmpi eq, %16, %19 : vector<32x1xi32>
    %c0 = arith.constant 0 : index
    %c0_4 = arith.constant 0 : index
    %21 = vector.load %arg0[%c0, %c0_4] : memref<32x64xbf16, #tpu.memory_space<vmem>>, vector<32x64xbf16>
    %cst = arith.constant 0.000000e+00 : bf16
    %22 = vector.broadcast %cst : bf16 to vector<1x64xbf16>
    %23 = vector.extract_strided_slice %21 {offsets = [0, 0], sizes = [31, 64], strides = [1, 1]} : vector<32x64xbf16> to vector<31x64xbf16>
    %24 = tpu.concatenate %22, %23 in 0 : vector<1x64xbf16>, vector<31x64xbf16> -> vector<32x64xbf16>
    %25 = vector.extract_strided_slice %21 {offsets = [1, 0], sizes = [31, 64], strides = [1, 1]} : vector<32x64xbf16> to vector<31x64xbf16>
    %26 = tpu.concatenate %25, %22 in 0 : vector<31x64xbf16>, vector<1x64xbf16> -> vector<32x64xbf16>
    %cst_5 = arith.constant 0.000000e+00 : bf16
    %27 = vector.broadcast %cst_5 : bf16 to vector<32x64xbf16>
    %28 = vector.shape_cast %18 : vector<32x1xi1> to vector<32x1xi1>
    %29 = vector.broadcast %28 : vector<32x1xi1> to vector<32x64xi1>
    %30 = arith.select %29, %27, %24 : vector<32x64xi1>, vector<32x64xbf16>
    %cst_6 = arith.constant 0.000000e+00 : bf16
    %31 = vector.broadcast %cst_6 : bf16 to vector<32x64xbf16>
    %32 = vector.shape_cast %20 : vector<32x1xi1> to vector<32x1xi1>
    %33 = vector.broadcast %32 : vector<32x1xi1> to vector<32x64xi1>
    %34 = arith.select %33, %31, %26 : vector<32x64xi1>, vector<32x64xbf16>
    %35 = tpu.concatenate %30, %21, %34 in 1 : vector<32x64xbf16>, vector<32x64xbf16>, vector<32x64xbf16> -> vector<32x192xbf16>
    %c0_7 = arith.constant 0 : index
    %c0_8 = arith.constant 0 : index
    %36 = vector.load %arg1[%c0_7, %c0_8] : memref<192x128xbf16, #tpu.memory_space<vmem>>, vector<192x128xbf16>
    %cst_9 = arith.constant dense<0.000000e+00> : vector<32x128xf32>
    %37 = tpu.matmul %35, %36, %cst_9 {dimension_numbers = #tpu.dot_dimension_numbers<[1], [0], [0], [1], [0, 0, 1, 1], [], []>} : vector<32x192xbf16>, vector<192x128xbf16>, vector<32x128xf32> -> vector<32x128xf32>
    %c0_10 = arith.constant 0 : index
    %c0_11 = arith.constant 0 : index
    %38 = vector.load %arg3[%c0_10, %c0_11] : memref<1x128xf32, #tpu.memory_space<vmem>>, vector<1x128xf32>
    %39 = vector.broadcast %38 : vector<1x128xf32> to vector<32x128xf32>
    %40 = arith.addf %37, %39 : vector<32x128xf32>
    %c0_12 = arith.constant 0 : index
    %c0_13 = arith.constant 0 : index
    %41 = vector.load %arg5[%c0_12, %c0_13] : memref<1x8xf32, #tpu.memory_space<vmem>>, vector<1x8xf32>
    %c0_14 = arith.constant 0 : index
    %c0_15 = arith.constant 0 : index
    %42 = vector.load %arg6[%c0_14, %c0_15] : memref<1x8xf32, #tpu.memory_space<vmem>>, vector<1x8xf32>
    %cst_16 = arith.constant dense<0.000000e+00> : vector<128xf32>
    %43 = vector.multi_reduction <add>, %40, %cst_16 [0] : vector<32x128xf32> to vector<128xf32>
    %44 = vector.shape_cast %43 : vector<128xf32> to vector<1x128xf32>
    %45 = arith.mulf %40, %40 : vector<32x128xf32>
    %cst_17 = arith.constant dense<0.000000e+00> : vector<128xf32>
    %46 = vector.multi_reduction <add>, %45, %cst_17 [0] : vector<32x128xf32> to vector<128xf32>
    %47 = vector.shape_cast %46 : vector<128xf32> to vector<1x128xf32>
    %48 = tpu.concatenate %44, %47 in 0 : vector<1x128xf32>, vector<1x128xf32> -> vector<2x128xf32>
    %c0_18 = arith.constant 0 : index
    %c0_19 = arith.constant 0 : index
    %49 = vector.load %arg9[%c0_18, %c0_19] : memref<128x8xf32, #tpu.memory_space<vmem>>, vector<128x8xf32>
    %cst_20 = arith.constant dense<0.000000e+00> : vector<2x8xf32>
    %50 = tpu.matmul %48, %49, %cst_20 {dimension_numbers = #tpu.dot_dimension_numbers<[1], [0], [0], [1], [0, 0, 1, 1], [], []>} : vector<2x128xf32>, vector<128x8xf32>, vector<2x8xf32> -> vector<2x8xf32>
    %51 = vector.extract_strided_slice %50 {offsets = [0, 0], sizes = [1, 8], strides = [1, 1]} : vector<2x8xf32> to vector<1x8xf32>
    %cst_21 = arith.constant 0.001953125 : f32
    %52 = vector.broadcast %cst_21 : f32 to vector<1x8xf32>
    %53 = arith.mulf %51, %52 : vector<1x8xf32>
    %54 = vector.extract_strided_slice %50 {offsets = [1, 0], sizes = [1, 8], strides = [1, 1]} : vector<2x8xf32> to vector<1x8xf32>
    %cst_22 = arith.constant 0.001953125 : f32
    %55 = vector.broadcast %cst_22 : f32 to vector<1x8xf32>
    %56 = arith.mulf %54, %55 : vector<1x8xf32>
    %57 = arith.mulf %53, %53 : vector<1x8xf32>
    %58 = arith.subf %56, %57 : vector<1x8xf32>
    %cst_23 = arith.constant 9.99999974E-6 : f32
    %59 = vector.broadcast %cst_23 : f32 to vector<1x8xf32>
    %60 = arith.addf %58, %59 : vector<1x8xf32>
    %61 = math.rsqrt %60 : vector<1x8xf32>
    %62 = arith.mulf %41, %61 : vector<1x8xf32>
    %63 = arith.mulf %53, %62 : vector<1x8xf32>
    %64 = arith.subf %42, %63 : vector<1x8xf32>
    %65 = tpu.concatenate %62, %64 in 0 : vector<1x8xf32>, vector<1x8xf32> -> vector<2x8xf32>
    %c0_24 = arith.constant 0 : index
    %c0_25 = arith.constant 0 : index
    %66 = vector.load %arg10[%c0_24, %c0_25] : memref<8x128xf32, #tpu.memory_space<vmem>>, vector<8x128xf32>
    %cst_26 = arith.constant dense<0.000000e+00> : vector<2x128xf32>
    %67 = tpu.matmul %65, %66, %cst_26 {dimension_numbers = #tpu.dot_dimension_numbers<[1], [0], [0], [1], [0, 0, 1, 1], [], []>} : vector<2x8xf32>, vector<8x128xf32>, vector<2x128xf32> -> vector<2x128xf32>
    %68 = vector.extract_strided_slice %67 {offsets = [0, 0], sizes = [1, 128], strides = [1, 1]} : vector<2x128xf32> to vector<1x128xf32>
    %69 = vector.broadcast %68 : vector<1x128xf32> to vector<32x128xf32>
    %70 = arith.mulf %40, %69 : vector<32x128xf32>
    %71 = vector.extract_strided_slice %67 {offsets = [1, 0], sizes = [1, 128], strides = [1, 1]} : vector<2x128xf32> to vector<1x128xf32>
    %72 = vector.broadcast %71 : vector<1x128xf32> to vector<32x128xf32>
    %73 = arith.addf %70, %72 : vector<32x128xf32>
    %cst_27 = arith.constant 0.000000e+00 : f32
    %74 = vector.broadcast %cst_27 : f32 to vector<32x128xf32>
    %75 = arith.maximumf %73, %74 : vector<32x128xf32>
    %76 = arith.truncf %75 : vector<32x128xf32> to vector<32x128xbf16>
    %cst_28 = arith.constant 0.000000e+00 : bf16
    %77 = vector.broadcast %cst_28 : bf16 to vector<1x128xbf16>
    %78 = vector.extract_strided_slice %76 {offsets = [0, 0], sizes = [31, 128], strides = [1, 1]} : vector<32x128xbf16> to vector<31x128xbf16>
    %79 = tpu.concatenate %77, %78 in 0 : vector<1x128xbf16>, vector<31x128xbf16> -> vector<32x128xbf16>
    %80 = vector.extract_strided_slice %76 {offsets = [1, 0], sizes = [31, 128], strides = [1, 1]} : vector<32x128xbf16> to vector<31x128xbf16>
    %81 = tpu.concatenate %80, %77 in 0 : vector<31x128xbf16>, vector<1x128xbf16> -> vector<32x128xbf16>
    %cst_29 = arith.constant 0.000000e+00 : bf16
    %82 = vector.broadcast %cst_29 : bf16 to vector<32x128xbf16>
    %83 = vector.shape_cast %18 : vector<32x1xi1> to vector<32x1xi1>
    %84 = vector.broadcast %83 : vector<32x1xi1> to vector<32x128xi1>
    %85 = arith.select %84, %82, %79 : vector<32x128xi1>, vector<32x128xbf16>
    %cst_30 = arith.constant 0.000000e+00 : bf16
    %86 = vector.broadcast %cst_30 : bf16 to vector<32x128xbf16>
    %87 = vector.shape_cast %20 : vector<32x1xi1> to vector<32x1xi1>
    %88 = vector.broadcast %87 : vector<32x1xi1> to vector<32x128xi1>
    %89 = arith.select %88, %86, %81 : vector<32x128xi1>, vector<32x128xbf16>
    %90 = tpu.concatenate %85, %76, %89 in 1 : vector<32x128xbf16>, vector<32x128xbf16>, vector<32x128xbf16> -> vector<32x384xbf16>
    %c0_31 = arith.constant 0 : index
    %c0_32 = arith.constant 0 : index
    %91 = vector.load %arg2[%c0_31, %c0_32] : memref<384x128xbf16, #tpu.memory_space<vmem>>, vector<384x128xbf16>
    %cst_33 = arith.constant dense<0.000000e+00> : vector<32x128xf32>
    %92 = tpu.matmul %90, %91, %cst_33 {dimension_numbers = #tpu.dot_dimension_numbers<[1], [0], [0], [1], [0, 0, 1, 1], [], []>} : vector<32x384xbf16>, vector<384x128xbf16>, vector<32x128xf32> -> vector<32x128xf32>
    %c0_34 = arith.constant 0 : index
    %c0_35 = arith.constant 0 : index
    %93 = vector.load %arg4[%c0_34, %c0_35] : memref<1x128xf32, #tpu.memory_space<vmem>>, vector<1x128xf32>
    %94 = vector.broadcast %93 : vector<1x128xf32> to vector<32x128xf32>
    %95 = arith.addf %92, %94 : vector<32x128xf32>
    %c0_36 = arith.constant 0 : index
    %c0_37 = arith.constant 0 : index
    %96 = vector.load %arg7[%c0_36, %c0_37] : memref<1x8xf32, #tpu.memory_space<vmem>>, vector<1x8xf32>
    %c0_38 = arith.constant 0 : index
    %c0_39 = arith.constant 0 : index
    %97 = vector.load %arg8[%c0_38, %c0_39] : memref<1x8xf32, #tpu.memory_space<vmem>>, vector<1x8xf32>
    %cst_40 = arith.constant dense<0.000000e+00> : vector<128xf32>
    %98 = vector.multi_reduction <add>, %95, %cst_40 [0] : vector<32x128xf32> to vector<128xf32>
    %99 = vector.shape_cast %98 : vector<128xf32> to vector<1x128xf32>
    %100 = arith.mulf %95, %95 : vector<32x128xf32>
    %cst_41 = arith.constant dense<0.000000e+00> : vector<128xf32>
    %101 = vector.multi_reduction <add>, %100, %cst_41 [0] : vector<32x128xf32> to vector<128xf32>
    %102 = vector.shape_cast %101 : vector<128xf32> to vector<1x128xf32>
    %103 = tpu.concatenate %99, %102 in 0 : vector<1x128xf32>, vector<1x128xf32> -> vector<2x128xf32>
    %c0_42 = arith.constant 0 : index
    %c0_43 = arith.constant 0 : index
    %104 = vector.load %arg9[%c0_42, %c0_43] : memref<128x8xf32, #tpu.memory_space<vmem>>, vector<128x8xf32>
    %cst_44 = arith.constant dense<0.000000e+00> : vector<2x8xf32>
    %105 = tpu.matmul %103, %104, %cst_44 {dimension_numbers = #tpu.dot_dimension_numbers<[1], [0], [0], [1], [0, 0, 1, 1], [], []>} : vector<2x128xf32>, vector<128x8xf32>, vector<2x8xf32> -> vector<2x8xf32>
    %106 = vector.extract_strided_slice %105 {offsets = [0, 0], sizes = [1, 8], strides = [1, 1]} : vector<2x8xf32> to vector<1x8xf32>
    %cst_45 = arith.constant 0.001953125 : f32
    %107 = vector.broadcast %cst_45 : f32 to vector<1x8xf32>
    %108 = arith.mulf %106, %107 : vector<1x8xf32>
    %109 = vector.extract_strided_slice %105 {offsets = [1, 0], sizes = [1, 8], strides = [1, 1]} : vector<2x8xf32> to vector<1x8xf32>
    %cst_46 = arith.constant 0.001953125 : f32
    %110 = vector.broadcast %cst_46 : f32 to vector<1x8xf32>
    %111 = arith.mulf %109, %110 : vector<1x8xf32>
    %112 = arith.mulf %108, %108 : vector<1x8xf32>
    %113 = arith.subf %111, %112 : vector<1x8xf32>
    %cst_47 = arith.constant 9.99999974E-6 : f32
    %114 = vector.broadcast %cst_47 : f32 to vector<1x8xf32>
    %115 = arith.addf %113, %114 : vector<1x8xf32>
    %116 = math.rsqrt %115 : vector<1x8xf32>
    %117 = arith.mulf %96, %116 : vector<1x8xf32>
    %118 = arith.mulf %108, %117 : vector<1x8xf32>
    %119 = arith.subf %97, %118 : vector<1x8xf32>
    %120 = tpu.concatenate %117, %119 in 0 : vector<1x8xf32>, vector<1x8xf32> -> vector<2x8xf32>
    %c0_48 = arith.constant 0 : index
    %c0_49 = arith.constant 0 : index
    %121 = vector.load %arg10[%c0_48, %c0_49] : memref<8x128xf32, #tpu.memory_space<vmem>>, vector<8x128xf32>
    %cst_50 = arith.constant dense<0.000000e+00> : vector<2x128xf32>
    %122 = tpu.matmul %120, %121, %cst_50 {dimension_numbers = #tpu.dot_dimension_numbers<[1], [0], [0], [1], [0, 0, 1, 1], [], []>} : vector<2x8xf32>, vector<8x128xf32>, vector<2x128xf32> -> vector<2x128xf32>
    %123 = vector.extract_strided_slice %122 {offsets = [0, 0], sizes = [1, 128], strides = [1, 1]} : vector<2x128xf32> to vector<1x128xf32>
    %124 = vector.broadcast %123 : vector<1x128xf32> to vector<32x128xf32>
    %125 = arith.mulf %95, %124 : vector<32x128xf32>
    %126 = vector.extract_strided_slice %122 {offsets = [1, 0], sizes = [1, 128], strides = [1, 1]} : vector<2x128xf32> to vector<1x128xf32>
    %127 = vector.broadcast %126 : vector<1x128xf32> to vector<32x128xf32>
    %128 = arith.addf %125, %127 : vector<32x128xf32>
    %cst_51 = arith.constant 0.000000e+00 : f32
    %129 = vector.broadcast %cst_51 : f32 to vector<32x128xf32>
    %130 = arith.maximumf %128, %129 : vector<32x128xf32>
    %c0_52 = arith.constant 0 : index
    %c0_53 = arith.constant 0 : index
    %131 = vector.load %arg11[%c0_52, %c0_53] : memref<32x128xf32, #tpu.memory_space<vmem>>, vector<32x128xf32>
    tpu.vector_store %arg11[%c0_52, %c0_53], %130 {strides = array<i32>} : memref<32x128xf32, #tpu.memory_space<vmem>>, vector<32x128xf32>,
    return
  }
}

</mosaic_0001>

<llo_original>
// kernel: tile.39
$region0: #{tile.39}
  %s0 = inlined_call_operand.vmem [shape: f32[8,16,8], index: 0, kind: input, shape index: {}]
  %s1 = inlined_call_operand.vmem [shape: f32[8,128], index: 1, kind: output, shape index: {}]
  %s2 = smov 3
  %v3 = vld [vmem:[%s0] ss:$16 sm:%s2]
  %s4 = smov 12
  %v5 = vld [vmem:[%s0] ss:$16 sm:%s4]
  %vm6 = vcmask 1043458
  %v7 = vsel %vm6, %v5, %v3
  %s8 = smov 48
  %v9 = vld [vmem:[%s0] ss:$16 sm:%s8]
  %vm10 = vcmask 1045508
  %v11 = vsel %vm10, %v9, %v7
  %s12 = smov 192
  %v13 = vld [vmem:[%s0] ss:$16 sm:%s12]
  %vm14 = vcmask 1047558
  %v15 = vsel %vm14, %v13, %v11
  %vm16 = vcmask 64512
  %17 = vst.msk [vmem:[%s1] sm:$0xff] %vm16, %v15
  %s18 = scalar_lea.vmem %s0, 15
  %s19 = smov 3
  %v20 = vld [vmem:[%s18] ss:$16 sm:%s19]
  %s21 = scalar_lea.vmem %s0, 15
  %s22 = smov 12
  %v23 = vld [vmem:[%s21] ss:$16 sm:%s22]
  %vm24 = vcmask 1043458
  %v25 = vsel %vm24, %v23, %v20
  %s26 = scalar_lea.vmem %s0, 15
  %s27 = smov 48
  %v28 = vld [vmem:[%s26] ss:$16 sm:%s27]
  %vm29 = vcmask 1045508
  %v30 = vsel %vm29, %v28, %v25
  %s31 = scalar_lea.vmem %s0, 15
  %s32 = smov 192
  %v33 = vld [vmem:[%s31] ss:$16 sm:%s32]
  %vm34 = vcmask 1047558
  %v35 = vsel %vm34, %v33, %v30
  %36 = vrot.lane.b32.xlu0 %v35, 120
  %v37 = vpop.permute.xlu0 %36
  %vm38 = vcmask 1048512
  %39 = vst.msk [vmem:[%s1] sm:$0xff] %vm38, %v37
  %s40 = scalar_lea.vmem %s0, 14
  %s41 = smov 3
  %v42 = vld [vmem:[%s40] ss:$16 sm:%s41]
  %s43 = scalar_lea.vmem %s0, 14
  %s44 = smov 12
  %v45 = vld [vmem:[%s43] ss:$16 sm:%s44]
  %vm46 = vcmask 1043458
  %v47 = vsel %vm46, %v45, %v42
  %s48 = scalar_lea.vmem %s0, 14
  %s49 = smov 48
  %v50 = vld [vmem:[%s48] ss:$16 sm:%s49]
  %vm51 = vcmask 1045508
  %v52 = vsel %vm51, %v50, %v47
  %s53 = scalar_lea.vmem %s0, 14
  %s54 = smov 192
  %v55 = vld [vmem:[%s53] ss:$16 sm:%s54]
  %vm56 = vcmask 1047558
  %v57 = vsel %vm56, %v55, %v52
  %58 = vrot.lane.b32.xlu0 %v57, 112
  %v59 = vpop.permute.xlu0 %58
  %vm60 = vcmask 982912
  %61 = vst.msk [vmem:[%s1] sm:$0xff] %vm60, %v59
  %s62 = scalar_lea.vmem %s0, 13
  %s63 = smov 3
  %v64 = vld [vmem:[%s62] ss:$16 sm:%s63]
  %s65 = scalar_lea.vmem %s0, 13
  %s66 = smov 12
  %v67 = vld [vmem:[%s65] ss:$16 sm:%s66]
  %vm68 = vcmask 1043458
  %v69 = vsel %vm68, %v67, %v64
  %s70 = scalar_lea.vmem %s0, 13
  %s71 = smov 48
  %v72 = vld [vmem:[%s70] ss:$16 sm:%s71]
  %vm73 = vcmask 1045508
  %v74 = vsel %vm73, %v72, %v69
  %s75 = scalar_lea.vmem %s0, 13
  %s76 = smov 192
  %v77 = vld [vmem:[%s75] ss:$16 sm:%s76]
  %vm78 = vcmask 1047558
  %v79 = vsel %vm78, %v77, %v74
  %80 = vrot.lane.b32.xlu0 %v79, 104
  %v81 = vpop.permute.xlu0 %80
  %vm82 = vcmask 917312
  %83 = vst.msk [vmem:[%s1] sm:$0xff] %vm82, %v81
  %s84 = scalar_lea.vmem %s0, 12
  %s85 = smov 3
  %v86 = vld [vmem:[%s84] ss:$16 sm:%s85]
  %s87 = scalar_lea.vmem %s0, 12
  %s88 = smov 12
  %v89 = vld [vmem:[%s87] ss:$16 sm:%s88]
  %vm90 = vcmask 1043458
  %v91 = vsel %vm90, %v89, %v86
  %s92 = scalar_lea.vmem %s0, 12
  %s93 = smov 48
  %v94 = vld [vmem:[%s92] ss:$16 sm:%s93]
  %vm95 = vcmask 1045508
  %v96 = vsel %vm95, %v94, %v91
  %s97 = scalar_lea.vmem %s0, 12
  %s98 = smov 192
  %v99 = vld [vmem:[%s97] ss:$16 sm:%s98]
  %vm100 = vcmask 1047558
  %v101 = vsel %vm100, %v99, %v96
  %102 = vrot.lane.b32.xlu0 %v101, 96
  %v103 = vpop.permute.xlu0 %102
  %vm104 = vcmask 851712
  %105 = vst.msk [vmem:[%s1] sm:$0xff] %vm104, %v103
  %s106 = scalar_lea.vmem %s0, 11
  %s107 = smov 3
  %v108 = vld [vmem:[%s106] ss:$16 sm:%s107]
  %s109 = scalar_lea.vmem %s0, 11
  %s110 = smov 12
  %v111 = vld [vmem:[%s109] ss:$16 sm:%s110]
  %vm112 = vcmask 1043458
  %v113 = vsel %vm112, %v111, %v108
  %s114 = scalar_lea.vmem %s0, 11
  %s115 = smov 48
  %v116 = vld [vmem:[%s114] ss:$16 sm:%s115]
  %vm117 = vcmask 1045508
  %v118 = vsel %vm117, %v116, %v113
  %s119 = scalar_lea.vmem %s0, 11
  %s120 = smov 192
  %v121 = vld [vmem:[%s119] ss:$16 sm:%s120]
  %vm122 = vcmask 1047558
  %v123 = vsel %vm122, %v121, %v118
  %124 = vrot.lane.b32.xlu0 %v123, 88
  %v125 = vpop.permute.xlu0 %124
  %vm126 = vcmask 786112
  %127 = vst.msk [vmem:[%s1] sm:$0xff] %vm126, %v125
  %s128 = scalar_lea.vmem %s0, 10
  %s129 = smov 3
  %v130 = vld [vmem:[%s128] ss:$16 sm:%s129]
  %s131 = scalar_lea.vmem %s0, 10
  %s132 = smov 12
  %v133 = vld [vmem:[%s131] ss:$16 sm:%s132]
  %vm134 = vcmask 1043458
  %v135 = vsel %vm134, %v133, %v130
  %s136 = scalar_lea.vmem %s0, 10
  %s137 = smov 48
  %v138 = vld [vmem:[%s136] ss:$16 sm:%s137]
  %vm139 = vcmask 1045508
  %v140 = vsel %vm139, %v138, %v135
  %s141 = scalar_lea.vmem %s0, 10
  %s142 = smov 192
  %v143 = vld [vmem:[%s141] ss:$16 sm:%s142]
  %vm144 = vcmask 1047558
  %v145 = vsel %vm144, %v143, %v140
  %146 = vrot.lane.b32.xlu0 %v145, 80
  %v147 = vpop.permute.xlu0 %146
  %vm148 = vcmask 720512
  %149 = vst.msk [vmem:[%s1] sm:$0xff] %vm148, %v147
  %s150 = scalar_lea.vmem %s0, 9
  %s151 = smov 3
  %v152 = vld [vmem:[%s150] ss:$16 sm:%s151]
  %s153 = scalar_lea.vmem %s0, 9
  %s154 = smov 12
  %v155 = vld [vmem:[%s153] ss:$16 sm:%s154]
  %vm156 = vcmask 1043458
  %v157 = vsel %vm156, %v155, %v152
  %s158 = scalar_lea.vmem %s0, 9
  %s159 = smov 48
  %v160 = vld [vmem:[%s158] ss:$16 sm:%s159]
  %vm161 = vcmask 1045508
  %v162 = vsel %vm161, %v160, %v157
  %s163 = scalar_lea.vmem %s0, 9
  %s164 = smov 192
  %v165 = vld [vmem:[%s163] ss:$16 sm:%s164]
  %vm166 = vcmask 1047558
  %v167 = vsel %vm166, %v165, %v162
  %168 = vrot.lane.b32.xlu0 %v167, 72
  %v169 = vpop.permute.xlu0 %168
  %vm170 = vcmask 654912
  %171 = vst.msk [vmem:[%s1] sm:$0xff] %vm170, %v169
  %s172 = scalar_lea.vmem %s0, 8
  %s173 = smov 3
  %v174 = vld [vmem:[%s172] ss:$16 sm:%s173]
  %s175 = scalar_lea.vmem %s0, 8
  %s176 = smov 12
  %v177 = vld [vmem:[%s175] ss:$16 sm:%s176]
  %vm178 = vcmask 1043458
  %v179 = vsel %vm178, %v177, %v174
  %s180 = scalar_lea.vmem %s0, 8
  %s181 = smov 48
  %v182 = vld [vmem:[%s180] ss:$16 sm:%s181]
  %vm183 = vcmask 1045508
  %v184 = vsel %vm183, %v182, %v179
  %s185 = scalar_lea.vmem %s0, 8
  %s186 = smov 192
  %v187 = vld [vmem:[%s185] ss:$16 sm:%s186]
  %vm188 = vcmask 1047558
  %v189 = vsel %vm188, %v187, %v184
  %190 = vrot.lane.b32.xlu0 %v189, 64
  %v191 = vpop.permute.xlu0 %190
  %vm192 = vcmask 589312
  %193 = vst.msk [vmem:[%s1] sm:$0xff] %vm192, %v191
  %s194 = scalar_lea.vmem %s0, 7
  %s195 = smov 3
  %v196 = vld [vmem:[%s194] ss:$16 sm:%s195]
  %s197 = scalar_lea.vmem %s0, 7
  %s198 = smov 12
  %v199 = vld [vmem:[%s197] ss:$16 sm:%s198]
  %vm200 = vcmask 1043458
  %v201 = vsel %vm200, %v199, %v196
  %s202 = scalar_lea.vmem %s0, 7
  %s203 = smov 48
  %v204 = vld [vmem:[%s202] ss:$16 sm:%s203]
  %vm205 = vcmask 1045508
  %v206 = vsel %vm205, %v204, %v201
  %s207 = scalar_lea.vmem %s0, 7
  %s208 = smov 192
  %v209 = vld [vmem:[%s207] ss:$16 sm:%s208]
  %vm210 = vcmask 1047558
  %v211 = vsel %vm210, %v209, %v206
  %212 = vrot.lane.b32.xlu0 %v211, 56
  %v213 = vpop.permute.xlu0 %212
  %vm214 = vcmask 523712
  %215 = vst.msk [vmem:[%s1] sm:$0xff] %vm214, %v213
  %s216 = scalar_lea.vmem %s0, 6
  %s217 = smov 3
  %v218 = vld [vmem:[%s216] ss:$16 sm:%s217]
  %s219 = scalar_lea.vmem %s0, 6
  %s220 = smov 12
  %v221 = vld [vmem:[%s219] ss:$16 sm:%s220]
  %vm222 = vcmask 1043458
  %v223 = vsel %vm222, %v221, %v218
  %s224 = scalar_lea.vmem %s0, 6
  %s225 = smov 48
  %v226 = vld [vmem:[%s224] ss:$16 sm:%s225]
  %vm227 = vcmask 1045508
  %v228 = vsel %vm227, %v226, %v223
  %s229 = scalar_lea.vmem %s0, 6
  %s230 = smov 192
  %v231 = vld [vmem:[%s229] ss:$16 sm:%s230]
  %vm232 = vcmask 1047558
  %v233 = vsel %vm232, %v231, %v228
  %234 = vrot.lane.b32.xlu0 %v233, 48
  %v235 = vpop.permute.xlu0 %234
  %vm236 = vcmask 458112
  %237 = vst.msk [vmem:[%s1] sm:$0xff] %vm236, %v235
  %s238 = scalar_lea.vmem %s0, 5
  %s239 = smov 3
  %v240 = vld [vmem:[%s238] ss:$16 sm:%s239]
  %s241 = scalar_lea.vmem %s0, 5
  %s242 = smov 12
  %v243 = vld [vmem:[%s241] ss:$16 sm:%s242]
  %vm244 = vcmask 1043458
  %v245 = vsel %vm244, %v243, %v240
  %s246 = scalar_lea.vmem %s0, 5
  %s247 = smov 48
  %v248 = vld [vmem:[%s246] ss:$16 sm:%s247]
  %vm249 = vcmask 1045508
  %v250 = vsel %vm249, %v248, %v245
  %s251 = scalar_lea.vmem %s0, 5
  %s252 = smov 192
  %v253 = vld [vmem:[%s251] ss:$16 sm:%s252]
  %vm254 = vcmask 1047558
  %v255 = vsel %vm254, %v253, %v250
  %256 = vrot.lane.b32.xlu0 %v255, 40
  %v257 = vpop.permute.xlu0 %256
  %vm258 = vcmask 392512
  %259 = vst.msk [vmem:[%s1] sm:$0xff] %vm258, %v257
  %s260 = scalar_lea.vmem %s0, 4
  %s261 = smov 3
  %v262 = vld [vmem:[%s260] ss:$16 sm:%s261]
  %s263 = scalar_lea.vmem %s0, 4
  %s264 = smov 12
  %v265 = vld [vmem:[%s263] ss:$16 sm:%s264]
  %vm266 = vcmask 1043458
  %v267 = vsel %vm266, %v265, %v262
  %s268 = scalar_lea.vmem %s0, 4
  %s269 = smov 48
  %v270 = vld [vmem:[%s268] ss:$16 sm:%s269]
  %vm271 = vcmask 1045508
  %v272 = vsel %vm271, %v270, %v267
  %s273 = scalar_lea.vmem %s0, 4
  %s274 = smov 192
  %v275 = vld [vmem:[%s273] ss:$16 sm:%s274]
  %vm276 = vcmask 1047558
  %v277 = vsel %vm276, %v275, %v272
  %278 = vrot.lane.b32.xlu0 %v277, 32
  %v279 = vpop.permute.xlu0 %278
  %vm280 = vcmask 326912
  %281 = vst.msk [vmem:[%s1] sm:$0xff] %vm280, %v279
  %s282 = scalar_lea.vmem %s0, 3
  %s283 = smov 3
  %v284 = vld [vmem:[%s282] ss:$16 sm:%s283]
  %s285 = scalar_lea.vmem %s0, 3
  %s286 = smov 12
  %v287 = vld [vmem:[%s285] ss:$16 sm:%s286]
  %vm288 = vcmask 1043458
  %v289 = vsel %vm288, %v287, %v284
  %s290 = scalar_lea.vmem %s0, 3
  %s291 = smov 48
  %v292 = vld [vmem:[%s290] ss:$16 sm:%s291]
  %vm293 = vcmask 1045508
  %v294 = vsel %vm293, %v292, %v289
  %s295 = scalar_lea.vmem %s0, 3
  %s296 = smov 192
  %v297 = vld [vmem:[%s295] ss:$16 sm:%s296]
  %vm298 = vcmask 1047558
  %v299 = vsel %vm298, %v297, %v294
  %300 = vrot.lane.b32.xlu0 %v299, 24
  %v301 = vpop.permute.xlu0 %300
  %vm302 = vcmask 261312
  %303 = vst.msk [vmem:[%s1] sm:$0xff] %vm302, %v301
  %s304 = scalar_lea.vmem %s0, 2
  %s305 = smov 3
  %v306 = vld [vmem:[%s304] ss:$16 sm:%s305]
  %s307 = scalar_lea.vmem %s0, 2
  %s308 = smov 12
  %v309 = vld [vmem:[%s307] ss:$16 sm:%s308]
  %vm310 = vcmask 1043458
  %v311 = vsel %vm310, %v309, %v306
  %s312 = scalar_lea.vmem %s0, 2
  %s313 = smov 48
  %v314 = vld [vmem:[%s312] ss:$16 sm:%s313]
  %vm315 = vcmask 1045508
  %v316 = vsel %vm315, %v314, %v311
  %s317 = scalar_lea.vmem %s0, 2
  %s318 = smov 192
  %v319 = vld [vmem:[%s317] ss:$16 sm:%s318]
  %vm320 = vcmask 1047558
  %v321 = vsel %vm320, %v319, %v316
  %322 = vrot.lane.b32.xlu0 %v321, 16
  %v323 = vpop.permute.xlu0 %322
  %vm324 = vcmask 195712
  %325 = vst.msk [vmem:[%s1] sm:$0xff] %vm324, %v323
  %s326 = scalar_lea.vmem %s0, 1
  %s327 = smov 3
  %v328 = vld [vmem:[%s326] ss:$16 sm:%s327]
  %s329 = scalar_lea.vmem %s0, 1
  %s330 = smov 12
  %v331 = vld [vmem:[%s329] ss:$16 sm:%s330]
  %vm332 = vcmask 1043458
  %v333 = vsel %vm332, %v331, %v328
  %s334 = scalar_lea.vmem %s0, 1
  %s335 = smov 48
  %v336 = vld [vmem:[%s334] ss:$16 sm:%s335]
  %vm337 = vcmask 1045508
  %v338 = vsel %vm337, %v336, %v333
  %s339 = scalar_lea.vmem %s0, 1
  %s340 = smov 192
  %v341 = vld [vmem:[%s339] ss:$16 sm:%s340]
  %vm342 = vcmask 1047558
  %v343 = vsel %vm342, %v341, %v338
  %344 = vrot.lane.b32.xlu0 %v343, 8
  %v345 = vpop.permute.xlu0 %344
  %vm346 = vcmask 130112
  %347 = vst.msk [vmem:[%s1] sm:$0xff] %vm346, %v345

// kernel: double_conv_pallas.1
$region0: #{double_conv_pallas.1}
  #allocation0 [shape = 'u32[]', space=smem, size = 0x4, offset = 0x4, fixed_abs, tag = 'smem constant byte address 0x4 - core index']
  #allocation1 [shape = 'u32[144,128]{1,0:T(1,128)}', space=vmem, size = 0x12000, scoped, tag = 'internal scratch']
  %s0 = inlined_call_operand.vmem [shape: bf16[32,64], index: 0, kind: input, shape index: {}]
  %s1 = inlined_call_operand.vmem [shape: bf16[192,128], index: 1, kind: input, shape index: {}]
  %s2 = inlined_call_operand.vmem [shape: bf16[384,128], index: 2, kind: input, shape index: {}]
  %s3 = inlined_call_operand.vmem [shape: f32[1,128], index: 3, kind: input, shape index: {}]
  %s4 = inlined_call_operand.vmem [shape: f32[1,128], index: 4, kind: input, shape index: {}]
  %s5 = inlined_call_operand.vmem [shape: f32[1,8], index: 5, kind: input, shape index: {}]
  %s6 = inlined_call_operand.vmem [shape: f32[1,8], index: 6, kind: input, shape index: {}]
  %s7 = inlined_call_operand.vmem [shape: f32[1,8], index: 7, kind: input, shape index: {}]
  %s8 = inlined_call_operand.vmem [shape: f32[1,8], index: 8, kind: input, shape index: {}]
  %s9 = inlined_call_operand.vmem [shape: f32[128,8], index: 9, kind: input, shape index: {}]
  %s10 = inlined_call_operand.vmem [shape: f32[8,128], index: 10, kind: input, shape index: {}]
  %s11 = inlined_call_operand.vmem [shape: f32[32,128], index: 11, kind: output, shape index: {}]
  %s12 = sld [smem:[#allocation0]]
  $region54: #{double_conv_pallas.1} parent=0
    _
  %s14 = ssub.s32 1, %s12
  %s15 = scalar_select 0, %s14, %s12
  // Predicated region
  $region2: #{double_conv_pallas.1} parent=0 // pred_check
    _
  $region3: #{double_conv_pallas.1} parent=0 // pred_check_branch
    %17 = sbr.rel (0) target = $region5
  $region4: #{double_conv_pallas.1} parent=0 // pred_region
    _
  $region5: #{double_conv_pallas.1} parent=0 // pred_fallthru
    _
  // Predicated region
  $region6: #{double_conv_pallas.1} parent=0 // pred_check
    _
  $region7: #{double_conv_pallas.1} parent=0 // pred_check_branch
    %19 = sbr.rel (0) target = $region9
  $region8: #{double_conv_pallas.1} parent=0 // pred_region
    _
  $region9: #{double_conv_pallas.1} parent=0 // pred_fallthru
    _
  // Predicated region
  $region10: #{double_conv_pallas.1} parent=0 // pred_check
    _
  $region11: #{double_conv_pallas.1} parent=0 // pred_check_branch
    %21 = sbr.rel (0) target = $region13
  $region12: #{double_conv_pallas.1} parent=0 // pred_region
    _
  $region13: #{double_conv_pallas.1} parent=0 // pred_fallthru
    _
  // Predicated region
  $region14: #{double_conv_pallas.1} parent=0 // pred_check
    _
  $region15: #{double_conv_pallas.1} parent=0 // pred_check_branch
    %23 = sbr.rel (0) target = $region17
  $region16: #{double_conv_pallas.1} parent=0 // pred_region
    _
  $region17: #{double_conv_pallas.1} parent=0 // pred_fallthru
    _
  // Predicated region
  $region18: #{double_conv_pallas.1} parent=0 // pred_check
    _
  $region19: #{double_conv_pallas.1} parent=0 // pred_check_branch
    %25 = sbr.rel (0) target = $region21
  $region20: #{double_conv_pallas.1} parent=0 // pred_region
    _
  $region21: #{double_conv_pallas.1} parent=0 // pred_fallthru
    _
  // Predicated region
  $region22: #{double_conv_pallas.1} parent=0 // pred_check
    _
  $region23: #{double_conv_pallas.1} parent=0 // pred_check_branch
    %27 = sbr.rel (0) target = $region25
  $region24: #{double_conv_pallas.1} parent=0 // pred_region
    _
  $region25: #{double_conv_pallas.1} parent=0 // pred_fallthru
    _
  // Predicated region
  $region26: #{double_conv_pallas.1} parent=0 // pred_check
    _
  $region27: #{double_conv_pallas.1} parent=0 // pred_check_branch
    %29 = sbr.rel (0) target = $region29
  $region28: #{double_conv_pallas.1} parent=0 // pred_region
    _
  $region29: #{double_conv_pallas.1} parent=0 // pred_fallthru
    _
  // Predicated region
  $region30: #{double_conv_pallas.1} parent=0 // pred_check
    _
  $region31: #{double_conv_pallas.1} parent=0 // pred_check_branch
    %31 = sbr.rel (0) target = $region33
  $region32: #{double_conv_pallas.1} parent=0 // pred_region
    _
  $region33: #{double_conv_pallas.1} parent=0 // pred_fallthru
    _
  // Predicated region
  $region34: #{double_conv_pallas.1} parent=0 // pred_check
    _
  $region35: #{double_conv_pallas.1} parent=0 // pred_check_branch
    %33 = sbr.rel (0) target = $region37
  $region36: #{double_conv_pallas.1} parent=0 // pred_region
    _
  $region37: #{double_conv_pallas.1} parent=0 // pred_fallthru
    _
  // Predicated region
  $region38: #{double_conv_pallas.1} parent=0 // pred_check
    _
  $region39: #{double_conv_pallas.1} parent=0 // pred_check_branch
    %35 = sbr.rel (0) target = $region41
  $region40: #{double_conv_pallas.1} parent=0 // pred_region
    _
  $region41: #{double_conv_pallas.1} parent=0 // pred_fallthru
    _
  // Predicated region
  $region42: #{double_conv_pallas.1} parent=0 // pred_check
    _
  $region43: #{double_conv_pallas.1} parent=0 // pred_check_branch
    %37 = sbr.rel (0) target = $region45
  $region44: #{double_conv_pallas.1} parent=0 // pred_region
    _
  $region45: #{double_conv_pallas.1} parent=0 // pred_fallthru
    _
  %v41 = vlaneseq
  %v42 = vshrl.u32 %v41, 7
  %v43 = vadd.s32 %v42, 8
  %v44 = vadd.s32 %v42, 16
  %v45 = vadd.s32 %v42, 24
  %vm46 = vcmp.lt.s32.totalorder %v42, 0
  %v47 = vsub.s32 0, %v42
  %v48 = vsel %vm46, %v47, %v42
  %v49 = vshrl.u32 %v48, 4
  %v50 = vand.u32 %v48, 15
  %v51 = vsub.s32 0, %v50
  %v52 = vsel %vm46, %v51, %v50
  %vm53 = vcmp.lt.s32.totalorder %v43, 0
  %v54 = vsub.s32 0, %v43
  %v55 = vsel %vm53, %v54, %v43
  %v56 = vshrl.u32 %v55, 4
  %v57 = vand.u32 %v55, 15
  %v58 = vsub.s32 0, %v57
  %v59 = vsel %vm53, %v58, %v57
  %vm60 = vcmp.lt.s32.totalorder %v44, 0
  %v61 = vsub.s32 0, %v44
  %v62 = vsel %vm60, %v61, %v44
  %v63 = vshrl.u32 %v62, 4
  %v64 = vand.u32 %v62, 15
  %v65 = vsub.s32 0, %v64
  %v66 = vsel %vm60, %v65, %v64
  %vm67 = vcmp.lt.s32.totalorder %v45, 0
  %v68 = vsub.s32 0, %v45
  %v69 = vsel %vm67, %v68, %v45
  %v70 = vshrl.u32 %v69, 4
  %v71 = vand.u32 %v69, 15
  %v72 = vsub.s32 0, %v71
  %v73 = vsel %vm67, %v72, %v71
  %vm74 = vcmp.ne.s32.totalorder %v52, 0
  %vm75 = vcmp.ne.s32.totalorder %v59, 0
  %vm76 = vcmp.ne.s32.totalorder %v66, 0
  %vm77 = vcmp.ne.s32.totalorder %v73, 0
  %vm78 = vcmp.lt.s32.totalorder %v52, 0
  %vm79 = vcmp.lt.s32.totalorder %v59, 0
  %vm80 = vcmp.lt.s32.totalorder %v66, 0
  %vm81 = vcmp.lt.s32.totalorder %v73, 0
  %vm82 = vmand %vm78, %vm74
  %vm83 = vmand %vm79, %vm75
  %vm84 = vmand %vm80, %vm76
  %vm85 = vmand %vm81, %vm77
  %v86 = vadd.s32 %v52, 16
  %v87 = vadd.s32 %v59, 16
  %v88 = vadd.s32 %v66, 16
  %v89 = vadd.s32 %v73, 16
  %v90 = vsel %vm82, %v86, %v52
  %v91 = vsel %vm83, %v87, %v59
  %v92 = vsel %vm84, %v88, %v66
  %v93 = vsel %vm85, %v89, %v73
  %vm94 = vcmp.eq.s32.totalorder %v90, 0
  %vm95 = vcmp.eq.s32.totalorder %v91, 0
  %vm96 = vcmp.eq.s32.totalorder %v92, 0
  %vm97 = vcmp.eq.s32.totalorder %v93, 0
  %vm98 = vcmp.eq.s32.totalorder %v90, 15
  %vm99 = vcmp.eq.s32.totalorder %v91, 15
  %vm100 = vcmp.eq.s32.totalorder %v92, 15
  %vm101 = vcmp.eq.s32.totalorder %v93, 15
  %v102 = vld [vmem:[%s0] sm:$0xf]
  %v103 = vld [vmem:[%s0 + $0x4] sm:$0xf]
  %v104 = vld [vmem:[%s0 + $0x8] sm:$0xf]
  %v105 = vld [vmem:[%s0 + $0xc] sm:$0xf]
  %v110 = vunpack.c.l.b16 %v102
  %v111 = vunpack.c.l.b16 %v103
  %v112 = vunpack.c.l.b16 %v104
  %v113 = vunpack.c.l.b16 %v105
  %v114 = vpack.c.b16 %v111, %v110
  %v115 = vpack.c.b16 %v113, %v112
  %vm116 = vsmask.f32 256
  %v118 = vshrl.u32 %v114, 16
  %v120 = vrot.slane %v118, 7
  %v121 = vshll.u32 %v114, 16
  %v123 = vor.u32 %v120, %v121
  %v125 = vshrl.u32 %v115, 16
  %v127 = vrot.slane %v125, 7
  %v128 = vshll.u32 %v115, 16
  %v130 = vor.u32 %v127, %v128
  %v131 = vsel %vm116, %v120, %v130
  %vm134 = vcmask 1040384
  %vm135 = vmand %vm134, %vm116
  %v136 = vsel %vm135, 0, %v123
  %vm137 = vsmask.f32 7424
  %v138 = vrot.slane %v121, 1
  %v139 = vor.u32 %v118, %v138
  %v140 = vrot.slane %v128, 1
  %v141 = vsel %vm137, %v139, %v140
  %v142 = vor.u32 %v125, %v140
  %vm145 = vcmask 1047552
  %vm146 = vmand %vm145, %vm137
  %v147 = vsel %vm146, %v142, 0
  %v148 = vsel %vm94, 1, 0
  %v149 = vsel %vm95, 1, 0
  %v150 = vsel %vm96, 1, 0
  %v151 = vsel %vm97, 1, 0
  %vm152 = vcmp.eq.s32.totalorder %v148, 1
  %vm153 = vcmp.eq.s32.totalorder %v149, 1
  %vm154 = vcmp.eq.s32.totalorder %v150, 1
  %vm155 = vcmp.eq.s32.totalorder %v151, 1
  %vm156 = vmpackc.low %vm152, %vm152
  %vm157 = vmpackc.low %vm153, %vm153
  %vm158 = vmpackc.low %vm154, %vm154
  %vm159 = vmpackc.low %vm155, %vm155
  %v160 = vsel %vm156, 65537, 0
  %v161 = vsel %vm157, 65537, 0
  %v162 = vsel %vm158, 65537, 0
  %v163 = vsel %vm159, 65537, 0
  %v164 = vunpack.c.l.b16 %v160
  %v165 = vunpack.c.l.b16 %v161
  %v166 = vunpack.c.l.b16 %v162
  %v167 = vunpack.c.l.b16 %v163
  %v168 = vpack.c.b16 %v165, %v164
  %v169 = vpack.c.b16 %v167, %v166
  %vm170 = vcmp.ne.s16.totalorder %v168, 0
  %vm171 = vcmp.ne.s16.totalorder %v169, 0
  %v172 = vsel %vm170, 0, %v136
  %v173 = vsel %vm171, 0, %v131
  %v174 = vsel %vm98, 1, 0
  %v175 = vsel %vm99, 1, 0
  %v176 = vsel %vm100, 1, 0
  %v177 = vsel %vm101, 1, 0
  %vm178 = vcmp.eq.s32.totalorder %v174, 1
  %vm179 = vcmp.eq.s32.totalorder %v175, 1
  %vm180 = vcmp.eq.s32.totalorder %v176, 1
  %vm181 = vcmp.eq.s32.totalorder %v177, 1
  %vm182 = vmpackc.low %vm178, %vm178
  %vm183 = vmpackc.low %vm179, %vm179
  %vm184 = vmpackc.low %vm180, %vm180
  %vm185 = vmpackc.low %vm181, %vm181
  %v186 = vsel %vm182, 65537, 0
  %v187 = vsel %vm183, 65537, 0
  %v188 = vsel %vm184, 65537, 0
  %v189 = vsel %vm185, 65537, 0
  %v190 = vunpack.c.l.b16 %v186
  %v191 = vunpack.c.l.b16 %v187
  %v192 = vunpack.c.l.b16 %v188
  %v193 = vunpack.c.l.b16 %v189
  %v194 = vpack.c.b16 %v191, %v190
  %v195 = vpack.c.b16 %v193, %v192
  %vm196 = vcmp.ne.s16.totalorder %v194, 0
  %vm197 = vcmp.ne.s16.totalorder %v195, 0
  %v198 = vsel %vm196, 0, %v141
  %v199 = vsel %vm197, 0, %v147
  %200 = vrot.lane.b32.xlu0 %v114, 64
  %v201 = vpop.permute.xlu0 %200
  %202 = vrot.lane.b32.xlu0 %v115, 64
  %v203 = vpop.permute.xlu0 %202
  %vm204 = vcmask 523264
  %v207 = vsel %vm204, %v172, %v201
  %v211 = vsel %vm204, %v173, %v203
  %v213 = vld [vmem:[%s1] sm:$0xf]
  %v214 = vld [vmem:[%s1 + $0x4] sm:$0xf]
  %v215 = vld [vmem:[%s1 + $0x8] sm:$0xf]
  %v216 = vld [vmem:[%s1 + $0xc] sm:$0xf]
  %v217 = vld [vmem:[%s1 + $0x10] sm:$0xf]
  %v218 = vld [vmem:[%s1 + $0x14] sm:$0xf]
  %v219 = vld [vmem:[%s1 + $0x18] sm:$0xf]
  %v220 = vld [vmem:[%s1 + $0x1c] sm:$0xf]
  %v221 = vld [vmem:[%s1 + $0x20] sm:$0xf]
  %v222 = vld [vmem:[%s1 + $0x24] sm:$0xf]
  %v223 = vld [vmem:[%s1 + $0x28] sm:$0xf]
  %v224 = vld [vmem:[%s1 + $0x2c] sm:$0xf]
  %v225 = vld [vmem:[%s1 + $0x30] sm:$0xf]
  %v226 = vld [vmem:[%s1 + $0x34] sm:$0xf]
  %v227 = vld [vmem:[%s1 + $0x38] sm:$0xf]
  %v228 = vld [vmem:[%s1 + $0x3c] sm:$0xf]
  %v229 = vld [vmem:[%s1 + $0x40] sm:$0xf]
  %v230 = vld [vmem:[%s1 + $0x44] sm:$0xf]
  %v231 = vld [vmem:[%s1 + $0x48] sm:$0xf]
  %v232 = vld [vmem:[%s1 + $0x4c] sm:$0xf]
  %v233 = vld [vmem:[%s1 + $0x50] sm:$0xf]
  %v234 = vld [vmem:[%s1 + $0x54] sm:$0xf]
  %v235 = vld [vmem:[%s1 + $0x58] sm:$0xf]
  %v236 = vld [vmem:[%s1 + $0x5c] sm:$0xf]
  %v237 = vld [vmem:[%s3] sm:$0x1]
  %v239 = vlaneseq
  %v240 = vshrl.u32 %v239, 7
  %v241 = vsub.s32 0, %v240
  %v242 = vrot.slane %v237, %v241
  %v268 = vunpack.c.l.b16 %v213
  %v269 = vunpack.c.l.b16 %v214
  %v270 = vunpack.c.l.b16 %v215
  %v271 = vunpack.c.l.b16 %v216
  %v272 = vunpack.c.l.b16 %v217
  %v273 = vunpack.c.l.b16 %v218
  %v274 = vunpack.c.l.b16 %v219
  %v275 = vunpack.c.l.b16 %v220
  %v276 = vunpack.c.l.b16 %v221
  %v277 = vunpack.c.l.b16 %v222
  %v278 = vunpack.c.l.b16 %v223
  %v279 = vunpack.c.l.b16 %v224
  %v280 = vunpack.c.l.b16 %v225
  %v281 = vunpack.c.l.b16 %v226
  %v282 = vunpack.c.l.b16 %v227
  %v283 = vunpack.c.l.b16 %v228
  %v284 = vunpack.c.l.b16 %v229
  %v285 = vunpack.c.l.b16 %v230
  %v286 = vunpack.c.l.b16 %v231
  %v287 = vunpack.c.l.b16 %v232
  %v288 = vunpack.c.l.b16 %v233
  %v289 = vunpack.c.l.b16 %v234
  %v290 = vunpack.c.l.b16 %v235
  %v291 = vunpack.c.l.b16 %v236
  %v292 = vpack.c.b16 %v269, %v268
  %v293 = vpack.c.b16 %v271, %v270
  %v294 = vpack.c.b16 %v273, %v272
  %v295 = vpack.c.b16 %v275, %v274
  %v296 = vpack.c.b16 %v277, %v276
  %v297 = vpack.c.b16 %v279, %v278
  %v298 = vpack.c.b16 %v281, %v280
  %v299 = vpack.c.b16 %v283, %v282
  %v300 = vpack.c.b16 %v285, %v284
  %v301 = vpack.c.b16 %v287, %v286
  %v302 = vpack.c.b16 %v289, %v288
  %v303 = vpack.c.b16 %v291, %v290
  %v317 = vsel %vm204, %v198, 0
  %v320 = vsel %vm204, %v199, 0
  %322 = vmatprep.subr.bf16.mxu0 0
  %323 = vmatpush1.bf16.msra.mxu0 %v292
  %324 = vmatprep.subr.bf16.mxu0 0
  %325 = vmatpush1.bf16.msra.mxu0 %v293
  %326 = vmatprep.subr.bf16.mxu0 0
  %327 = vmatpush1.bf16.msra.mxu0 %v294
  %328 = vmatprep.subr.bf16.mxu0 0
  %329 = vmatpush1.bf16.msra.mxu0 %v295
  %330 = vmatprep.subr.bf16.mxu0 0
  %331 = vmatpush1.bf16.msra.mxu0 %v296
  %332 = vmatprep.subr.bf16.mxu0 0
  %333 = vmatpush1.bf16.msra.mxu0 %v297
  %334 = vmatprep.subr.bf16.mxu0 0
  %335 = vmatpush1.bf16.msra.mxu0 %v298
  %336 = vmatprep.subr.bf16.mxu0 0
  %337 = vmatpush1.bf16.msra.mxu0 %v299
  %338 = vmatprep.subr.bf16.mxu0 0
  %339 = vmatpush1.bf16.msra.mxu0 %v300
  %340 = vmatprep.subr.bf16.mxu0 0
  %341 = vmatpush1.bf16.msra.mxu0 %v301
  %342 = vmatprep.subr.bf16.mxu0 0
  %343 = vmatpush1.bf16.msra.mxu0 %v302
  %344 = vmatprep.subr.bf16.mxu0 0
  %345 = vmatpush1.bf16.msra.mxu0 %v303
  %346 = vmatprep.subr.bf16.mxu0 0
  %347 = vmatpush1.bf16.msra.mxu0 0
  %348 = vmatprep.subr.bf16.mxu0 0
  %349 = vmatpush1.bf16.msra.mxu0 0
  %350 = vmatprep.subr.bf16.mxu0 0
  %351 = vmatpush1.bf16.msra.mxu0 0
  %352 = vmatprep.subr.bf16.mxu0 0
  %353 = vmatpush1.bf16.msra.mxu0 0
  %354 = vmatprep.mubr.bf16.mxu0 %v317
  %355 = vmatmul.mubr.bf16.gmra.mrb[0].mxu0 %v207
  %v356 = vpop.f32.mrb[0].mxu0
  %v357 = vadd.f32 %v242, %v356
  %v358 = vpop.f32.mrb[0].mxu0
  %v359 = vpop.f32.mrb[0].mxu0
  %v360 = vadd.f32 %v242, %v359
  %v361 = vpop.f32.mrb[0].mxu0
  %362 = vmatprep.mubr.bf16.mxu0 %v320
  %363 = vmatmul.mubr.bf16.gmra.mrb[0].mxu0 %v211
  %v364 = vpop.f32.mrb[0].mxu0
  %v365 = vadd.f32 %v242, %v364
  %v366 = vpop.f32.mrb[0].mxu0
  %v367 = vpop.f32.mrb[0].mxu0
  %v368 = vadd.f32 %v242, %v367
  %v369 = vpop.f32.mrb[0].mxu0
  %370 = vdwg.mxu0
  %v371 = vld [vmem:[%s5] sm:$0x1]
  %v372 = vld [vmem:[%s6] sm:$0x1]
  %v373 = vadd.f32 %v357, %v360
  %v374 = vadd.f32 %v373, %v365
  %v375 = vadd.f32 %v374, %v368
  %v376 = vrot.slane %v375, 4
  %v377 = vadd.f32 %v375, %v376
  %v378 = vrot.slane %v377, 2
  %v379 = vadd.f32 %v377, %v378
  %v380 = vrot.slane %v379, 1
  %v381 = vadd.f32 %v379, %v380
  %v382 = vmul.f32 %v357, %v357
  %v383 = vmul.f32 %v360, %v360
  %v384 = vmul.f32 %v365, %v365
  %v385 = vmul.f32 %v368, %v368
  %v386 = vadd.f32 %v382, %v383
  %v387 = vadd.f32 %v386, %v384
  %v388 = vadd.f32 %v387, %v385
  %v389 = vrot.slane %v388, 4
  %v390 = vadd.f32 %v388, %v389
  %v391 = vrot.slane %v390, 2
  %v392 = vadd.f32 %v390, %v391
  %v393 = vrot.slane %v392, 1
  %v394 = vadd.f32 %v392, %v393
  %vm395 = vcmask 1040384
  %v396 = vsel %vm395, %v381, %v394
  %v397 = vld [vmem:[%s9] sm:$0xff]
  %v398 = vld [vmem:[%s9 + $0x8] sm:$0xff]
  %v399 = vld [vmem:[%s9 + $0x10] sm:$0xff]
  %v400 = vld [vmem:[%s9 + $0x18] sm:$0xff]
  %v401 = vld [vmem:[%s9 + $0x20] sm:$0xff]
  %v402 = vld [vmem:[%s9 + $0x28] sm:$0xff]
  %v403 = vld [vmem:[%s9 + $0x30] sm:$0xff]
  %v404 = vld [vmem:[%s9 + $0x38] sm:$0xff]
  %v405 = vld [vmem:[%s9 + $0x40] sm:$0xff]
  %v406 = vld [vmem:[%s9 + $0x48] sm:$0xff]
  %v407 = vld [vmem:[%s9 + $0x50] sm:$0xff]
  %v408 = vld [vmem:[%s9 + $0x58] sm:$0xff]
  %v409 = vld [vmem:[%s9 + $0x60] sm:$0xff]
  %v410 = vld [vmem:[%s9 + $0x68] sm:$0xff]
  %v411 = vld [vmem:[%s9 + $0x70] sm:$0xff]
  %v412 = vld [vmem:[%s9 + $0x78] sm:$0xff]
  %413 = vmatprep.subr.mxu0 0.0
  %414 = vmatpush1.msra.mxu0 %v397
  %415 = vmatprep.subr.mxu0 0.0
  %416 = vmatpush1.msra.mxu0 %v398
  %417 = vmatprep.subr.mxu0 0.0
  %418 = vmatpush1.msra.mxu0 %v399
  %419 = vmatprep.subr.mxu0 0.0
  %420 = vmatpush1.msra.mxu0 %v400
  %421 = vmatprep.subr.mxu0 0.0
  %422 = vmatpush1.msra.mxu0 %v401
  %423 = vmatprep.subr.mxu0 0.0
  %424 = vmatpush1.msra.mxu0 %v402
  %425 = vmatprep.subr.mxu0 0.0
  %426 = vmatpush1.msra.mxu0 %v403
  %427 = vmatprep.subr.mxu0 0.0
  %428 = vmatpush1.msra.mxu0 %v404
  %429 = vmatprep.subr.mxu0 0.0
  %430 = vmatpush1.msra.mxu0 %v405
  %431 = vmatprep.subr.mxu0 0.0
  %432 = vmatpush1.msra.mxu0 %v406
  %433 = vmatprep.subr.mxu0 0.0
  %434 = vmatpush1.msra.mxu0 %v407
  %435 = vmatprep.subr.mxu0 0.0
  %436 = vmatpush1.msra.mxu0 %v408
  %437 = vmatprep.subr.mxu0 0.0
  %438 = vmatpush1.msra.mxu0 %v409
  %439 = vmatprep.subr.mxu0 0.0
  %440 = vmatpush1.msra.mxu0 %v410
  %441 = vmatprep.subr.mxu0 0.0
  %442 = vmatpush1.msra.mxu0 %v411
  %443 = vmatprep.subr.mxu0 0.0
  %444 = vmatpush1.msra.mxu0 %v412
  %445 = vmatprep.subr.mxu0 0.0
  %446 = vmatpush1.msra.mxu0 0.0
  %447 = vmatprep.subr.mxu0 0.0
  %448 = vmatpush1.msra.mxu0 0.0
  %449 = vmatprep.subr.mxu0 0.0
  %450 = vmatpush1.msra.mxu0 0.0
  %451 = vmatprep.subr.mxu0 0.0
  %452 = vmatpush1.msra.mxu0 0.0
  %453 = vmatprep.subr.mxu0 0.0
  %454 = vmatpush1.msra.mxu0 0.0
  %455 = vmatprep.subr.mxu0 0.0
  %456 = vmatpush1.msra.mxu0 0.0
  %457 = vmatprep.subr.mxu0 0.0
  %458 = vmatpush1.msra.mxu0 0.0
  %459 = vmatprep.subr.mxu0 0.0
  %460 = vmatpush1.msra.mxu0 0.0
  %461 = vmatprep.subr.mxu0 0.0
  %462 = vmatpush1.msra.mxu0 0.0
  %463 = vmatprep.subr.mxu0 0.0
  %464 = vmatpush1.msra.mxu0 0.0
  %465 = vmatprep.subr.mxu0 0.0
  %466 = vmatpush1.msra.mxu0 0.0
  %467 = vmatprep.subr.mxu0 0.0
  %468 = vmatpush1.msra.mxu0 0.0
  %469 = vmatprep.subr.mxu0 0.0
  %470 = vmatpush1.msra.mxu0 0.0
  %471 = vmatprep.subr.mxu0 0.0
  %472 = vmatpush1.msra.mxu0 0.0
  %473 = vmatprep.subr.mxu0 0.0
  %474 = vmatpush1.msra.mxu0 0.0
  %475 = vmatprep.subr.mxu0 0.0
  %476 = vmatpush1.msra.mxu0 0.0
  %477 = vmatprep.mubr.f32.mxu0 0.0
  %478 = vmatmul.mubr.f32.gmra.mrb[0].mxu0 %v396
  %v479 = vpop.f32.mrb[0].mxu0
  %v480 = vadd.f32 0.0, %v479
  %v481 = vpop.f32.mrb[0].mxu0
  %482 = vdwg.mxu0
  %v483 = vmul.f32 %v480, 0.001953125
  %v484 = vmul.f32 %v483, %v483
  %v486 = vrot.slane %v484, 7
  %v488 = vsub.f32 %v483, %v486
  %v489 = vadd.f32 %v488, 1e-05
  %v490 = vrsqrt.pop %v489
  %v493 = vunpack.c.l.s4 1966171168
  %v494 = vunpack.c.0.s8 %v493
  %v495 = vlaneseq
  %v496 = vshrl.u32 %v495, 7
  %v497 = vsub.s32 %v494, %v496
  %v498 = vrot.slane %v490, %v497
  %v499 = vcombine.high %v498, %v498
  %v501 = vunpack.c.l.s4 1966171168
  %v502 = vunpack.c.0.s8 %v501
  %v503 = vlaneseq
  %v504 = vshrl.u32 %v503, 7
  %v505 = vsub.s32 %v502, %v504
  %v506 = vrot.slane %v499, %v505
  %v508 = vmul.f32 %v371, %v506
  %v509 = vmul.f32 %v483, %v508
  %v510 = vsub.f32 %v372, %v509
  %v512 = vlaneseq
  %v513 = vshrl.u32 %v512, 7
  %v514 = vsub.s32 0, %v513
  %v515 = vrot.slane %v510, %v514
  %v517 = vsel %vm395, %v508, %v515
  %v518 = vld [vmem:[%s10] sm:$0xff]
  %vm519 = vcmask 64512
  %v521 = vsel %vm519, %v517, 0
  %523 = vmatprep.subr.mxu0 0.0
  %524 = vmatpush1.msra.mxu0 %v518
  %525 = vmatprep.subr.mxu0 0.0
  %526 = vmatpush1.msra.mxu0 0.0
  %527 = vmatprep.subr.mxu0 0.0
  %528 = vmatpush1.msra.mxu0 0.0
  %529 = vmatprep.subr.mxu0 0.0
  %530 = vmatpush1.msra.mxu0 0.0
  %531 = vmatprep.subr.mxu0 0.0
  %532 = vmatpush1.msra.mxu0 0.0
  %533 = vmatprep.subr.mxu0 0.0
  %534 = vmatpush1.msra.mxu0 0.0
  %535 = vmatprep.subr.mxu0 0.0
  %536 = vmatpush1.msra.mxu0 0.0
  %537 = vmatprep.subr.mxu0 0.0
  %538 = vmatpush1.msra.mxu0 0.0
  %539 = vmatprep.subr.mxu0 0.0
  %540 = vmatpush1.msra.mxu0 0.0
  %541 = vmatprep.subr.mxu0 0.0
  %542 = vmatpush1.msra.mxu0 0.0
  %543 = vmatprep.subr.mxu0 0.0
  %544 = vmatpush1.msra.mxu0 0.0
  %545 = vmatprep.subr.mxu0 0.0
  %546 = vmatpush1.msra.mxu0 0.0
  %547 = vmatprep.subr.mxu0 0.0
  %548 = vmatpush1.msra.mxu0 0.0
  %549 = vmatprep.subr.mxu0 0.0
  %550 = vmatpush1.msra.mxu0 0.0
  %551 = vmatprep.subr.mxu0 0.0
  %552 = vmatpush1.msra.mxu0 0.0
  %553 = vmatprep.subr.mxu0 0.0
  %554 = vmatpush1.msra.mxu0 0.0
  %555 = vmatprep.subr.mxu0 0.0
  %556 = vmatpush1.msra.mxu0 0.0
  %557 = vmatprep.subr.mxu0 0.0
  %558 = vmatpush1.msra.mxu0 0.0
  %559 = vmatprep.subr.mxu0 0.0
  %560 = vmatpush1.msra.mxu0 0.0
  %561 = vmatprep.subr.mxu0 0.0
  %562 = vmatpush1.msra.mxu0 0.0
  %563 = vmatprep.subr.mxu0 0.0
  %564 = vmatpush1.msra.mxu0 0.0
  %565 = vmatprep.subr.mxu0 0.0
  %566 = vmatpush1.msra.mxu0 0.0
  %567 = vmatprep.subr.mxu0 0.0
  %568 = vmatpush1.msra.mxu0 0.0
  %569 = vmatprep.subr.mxu0 0.0
  %570 = vmatpush1.msra.mxu0 0.0
  %571 = vmatprep.subr.mxu0 0.0
  %572 = vmatpush1.msra.mxu0 0.0
  %573 = vmatprep.subr.mxu0 0.0
  %574 = vmatpush1.msra.mxu0 0.0
  %575 = vmatprep.subr.mxu0 0.0
  %576 = vmatpush1.msra.mxu0 0.0
  %577 = vmatprep.subr.mxu0 0.0
  %578 = vmatpush1.msra.mxu0 0.0
  %579 = vmatprep.subr.mxu0 0.0
  %580 = vmatpush1.msra.mxu0 0.0
  %581 = vmatprep.subr.mxu0 0.0
  %582 = vmatpush1.msra.mxu0 0.0
  %583 = vmatprep.subr.mxu0 0.0
  %584 = vmatpush1.msra.mxu0 0.0
  %585 = vmatprep.subr.mxu0 0.0
  %586 = vmatpush1.msra.mxu0 0.0
  %587 = vmatprep.mubr.f32.mxu0 0.0
  %588 = vmatmul.mubr.f32.gmra.mrb[0].mxu0 %v521
  %v589 = vpop.f32.mrb[0].mxu0
  %v590 = vadd.f32 0.0, %v589
  %v591 = vpop.f32.mrb[0].mxu0
  %592 = vdwg.mxu0
  %v593 = vlaneseq
  %v594 = vshrl.u32 %v593, 7
  %v595 = vsub.s32 0, %v594
  %v596 = vrot.slane %v590, %v595
  %v597 = vmul.f32 %v357, %v596
  %v598 = vmul.f32 %v360, %v596
  %v599 = vmul.f32 %v365, %v596
  %v600 = vmul.f32 %v368, %v596
  %v601 = vlaneseq
  %v602 = vshrl.u32 %v601, 7
  %v603 = vsub.s32 1, %v602
  %v604 = vrot.slane %v590, %v603
  %v605 = vadd.f32 %v597, %v604
  %v606 = vadd.f32 %v598, %v604
  %v607 = vadd.f32 %v599, %v604
  %v608 = vadd.f32 %v600, %v604
  %v609 = vmax.f32 %v605, 0.0
  %v610 = vmax.f32 %v606, 0.0
  %v611 = vmax.f32 %v607, 0.0
  %v612 = vmax.f32 %v608, 0.0
  %v613 = vpack.c.bf16 %v610, %v609
  %v614 = vpack.c.bf16 %v612, %v611
  %v616 = vshrl.u32 %v613, 16
  %v618 = vrot.slane %v616, 7
  %v619 = vshll.u32 %v613, 16
  %v621 = vor.u32 %v618, %v619
  %v623 = vshrl.u32 %v614, 16
  %v625 = vrot.slane %v623, 7
  %v626 = vshll.u32 %v614, 16
  %v628 = vor.u32 %v625, %v626
  %v629 = vsel %vm116, %v618, %v628
  %v632 = vsel %vm135, 0, %v621
  %v633 = vrot.slane %v619, 1
  %v634 = vor.u32 %v616, %v633
  %v635 = vrot.slane %v626, 1
  %v636 = vsel %vm137, %v634, %v635
  %v637 = vor.u32 %v623, %v635
  %v640 = vsel %vm146, %v637, 0
  %v641 = vsel %vm170, 0, %v632
  %v642 = vsel %vm171, 0, %v629
  %v643 = vsel %vm196, 0, %v636
  %v644 = vsel %vm197, 0, %v640
  %v645 = vld [vmem:[%s2] sm:$0xf]
  %v646 = vld [vmem:[%s2 + $0x4] sm:$0xf]
  %v647 = vld [vmem:[%s2 + $0x8] sm:$0xf]
  %v648 = vld [vmem:[%s2 + $0xc] sm:$0xf]
  %v649 = vld [vmem:[%s2 + $0x10] sm:$0xf]
  %v650 = vld [vmem:[%s2 + $0x14] sm:$0xf]
  %v651 = vld [vmem:[%s2 + $0x18] sm:$0xf]
  %v652 = vld [vmem:[%s2 + $0x1c] sm:$0xf]
  %v653 = vld [vmem:[%s2 + $0x20] sm:$0xf]
  %v654 = vld [vmem:[%s2 + $0x24] sm:$0xf]
  %v655 = vld [vmem:[%s2 + $0x28] sm:$0xf]
  %v656 = vld [vmem:[%s2 + $0x2c] sm:$0xf]
  %v657 = vld [vmem:[%s2 + $0x30] sm:$0xf]
  %v658 = vld [vmem:[%s2 + $0x34] sm:$0xf]
  %v659 = vld [vmem:[%s2 + $0x38] sm:$0xf]
  %v660 = vld [vmem:[%s2 + $0x3c] sm:$0xf]
  %v661 = vld [vmem:[%s2 + $0x40] sm:$0xf]
  %v662 = vld [vmem:[%s2 + $0x44] sm:$0xf]
  %v663 = vld [vmem:[%s2 + $0x48] sm:$0xf]
  %v664 = vld [vmem:[%s2 + $0x4c] sm:$0xf]
  %v665 = vld [vmem:[%s2 + $0x50] sm:$0xf]
  %v666 = vld [vmem:[%s2 + $0x54] sm:$0xf]
  %v667 = vld [vmem:[%s2 + $0x58] sm:$0xf]
  %v668 = vld [vmem:[%s2 + $0x5c] sm:$0xf]
  %v669 = vld [vmem:[%s2 + $0x60] sm:$0xf]
  %v670 = vld [vmem:[%s2 + $0x64] sm:$0xf]
  %v671 = vld [vmem:[%s2 + $0x68] sm:$0xf]
  %v672 = vld [vmem:[%s2 + $0x6c] sm:$0xf]
  %v673 = vld [vmem:[%s2 + $0x70] sm:$0xf]
  %v674 = vld [vmem:[%s2 + $0x74] sm:$0xf]
  %v675 = vld [vmem:[%s2 + $0x78] sm:$0xf]
  %v676 = vld [vmem:[%s2 + $0x7c] sm:$0xf]
  %v677 = vld [vmem:[%s2 + $0x80] sm:$0xf]
  %v678 = vld [vmem:[%s2 + $0x84] sm:$0xf]
  %v679 = vld [vmem:[%s2 + $0x88] sm:$0xf]
  %v680 = vld [vmem:[%s2 + $0x8c] sm:$0xf]
  %v681 = vld [vmem:[%s2 + $0x90] sm:$0xf]
  %v682 = vld [vmem:[%s2 + $0x94] sm:$0xf]
  %v683 = vld [vmem:[%s2 + $0x98] sm:$0xf]
  %v684 = vld [vmem:[%s2 + $0x9c] sm:$0xf]
  %v685 = vld [vmem:[%s2 + $0xa0] sm:$0xf]
  %v686 = vld [vmem:[%s2 + $0xa4] sm:$0xf]
  %v687 = vld [vmem:[%s2 + $0xa8] sm:$0xf]
  %v688 = vld [vmem:[%s2 + $0xac] sm:$0xf]
  %v689 = vld [vmem:[%s2 + $0xb0] sm:$0xf]
  %v690 = vld [vmem:[%s2 + $0xb4] sm:$0xf]
  %v691 = vld [vmem:[%s2 + $0xb8] sm:$0xf]
  %v692 = vld [vmem:[%s2 + $0xbc] sm:$0xf]
  %v693 = vld [vmem:[%s4] sm:$0x1]
  %v695 = vlaneseq
  %v696 = vshrl.u32 %v695, 7
  %v697 = vsub.s32 0, %v696
  %v698 = vrot.slane %v693, %v697
  %v748 = vunpack.c.l.b16 %v645
  %v749 = vunpack.c.l.b16 %v646
  %v750 = vunpack.c.l.b16 %v647
  %v751 = vunpack.c.l.b16 %v648
  %v752 = vunpack.c.l.b16 %v649
  %v753 = vunpack.c.l.b16 %v650
  %v754 = vunpack.c.l.b16 %v651
  %v755 = vunpack.c.l.b16 %v652
  %v756 = vunpack.c.l.b16 %v653
  %v757 = vunpack.c.l.b16 %v654
  %v758 = vunpack.c.l.b16 %v655
  %v759 = vunpack.c.l.b16 %v656
  %v760 = vunpack.c.l.b16 %v657
  %v761 = vunpack.c.l.b16 %v658
  %v762 = vunpack.c.l.b16 %v659
  %v763 = vunpack.c.l.b16 %v660
  %v764 = vunpack.c.l.b16 %v661
  %v765 = vunpack.c.l.b16 %v662
  %v766 = vunpack.c.l.b16 %v663
  %v767 = vunpack.c.l.b16 %v664
  %v768 = vunpack.c.l.b16 %v665
  %v769 = vunpack.c.l.b16 %v666
  %v770 = vunpack.c.l.b16 %v667
  %v771 = vunpack.c.l.b16 %v668
  %v772 = vunpack.c.l.b16 %v669
  %v773 = vunpack.c.l.b16 %v670
  %v774 = vunpack.c.l.b16 %v671
  %v775 = vunpack.c.l.b16 %v672
  %v776 = vunpack.c.l.b16 %v673
  %v777 = vunpack.c.l.b16 %v674
  %v778 = vunpack.c.l.b16 %v675
  %v779 = vunpack.c.l.b16 %v676
  %v780 = vunpack.c.l.b16 %v677
  %v781 = vunpack.c.l.b16 %v678
  %v782 = vunpack.c.l.b16 %v679
  %v783 = vunpack.c.l.b16 %v680
  %v784 = vunpack.c.l.b16 %v681
  %v785 = vunpack.c.l.b16 %v682
  %v786 = vunpack.c.l.b16 %v683
  %v787 = vunpack.c.l.b16 %v684
  %v788 = vunpack.c.l.b16 %v685
  %v789 = vunpack.c.l.b16 %v686
  %v790 = vunpack.c.l.b16 %v687
  %v791 = vunpack.c.l.b16 %v688
  %v792 = vunpack.c.l.b16 %v689
  %v793 = vunpack.c.l.b16 %v690
  %v794 = vunpack.c.l.b16 %v691
  %v795 = vunpack.c.l.b16 %v692
  %v796 = vpack.c.b16 %v749, %v748
  %v797 = vpack.c.b16 %v751, %v750
  %v798 = vpack.c.b16 %v753, %v752
  %v799 = vpack.c.b16 %v755, %v754
  %v800 = vpack.c.b16 %v757, %v756
  %v801 = vpack.c.b16 %v759, %v758
  %v802 = vpack.c.b16 %v761, %v760
  %v803 = vpack.c.b16 %v763, %v762
  %v804 = vpack.c.b16 %v765, %v764
  %v805 = vpack.c.b16 %v767, %v766
  %v806 = vpack.c.b16 %v769, %v768
  %v807 = vpack.c.b16 %v771, %v770
  %v808 = vpack.c.b16 %v773, %v772
  %v809 = vpack.c.b16 %v775, %v774
  %v810 = vpack.c.b16 %v777, %v776
  %v811 = vpack.c.b16 %v779, %v778
  %v812 = vpack.c.b16 %v781, %v780
  %v813 = vpack.c.b16 %v783, %v782
  %v814 = vpack.c.b16 %v785, %v784
  %v815 = vpack.c.b16 %v787, %v786
  %v816 = vpack.c.b16 %v789, %v788
  %v817 = vpack.c.b16 %v791, %v790
  %v818 = vpack.c.b16 %v793, %v792
  %v819 = vpack.c.b16 %v795, %v794
  %844 = vmatprep.subr.bf16.mxu0 0
  %845 = vmatpush1.bf16.msra.mxu0 %v796
  %846 = vmatprep.subr.bf16.mxu0 0
  %847 = vmatpush1.bf16.msra.mxu0 %v797
  %848 = vmatprep.subr.bf16.mxu0 0
  %849 = vmatpush1.bf16.msra.mxu0 %v798
  %850 = vmatprep.subr.bf16.mxu0 0
  %851 = vmatpush1.bf16.msra.mxu0 %v799
  %852 = vmatprep.subr.bf16.mxu0 0
  %853 = vmatpush1.bf16.msra.mxu0 %v800
  %854 = vmatprep.subr.bf16.mxu0 0
  %855 = vmatpush1.bf16.msra.mxu0 %v801
  %856 = vmatprep.subr.bf16.mxu0 0
  %857 = vmatpush1.bf16.msra.mxu0 %v802
  %858 = vmatprep.subr.bf16.mxu0 0
  %859 = vmatpush1.bf16.msra.mxu0 %v803
  %860 = vmatprep.subr.bf16.mxu0 0
  %861 = vmatpush1.bf16.msra.mxu0 %v804
  %862 = vmatprep.subr.bf16.mxu0 0
  %863 = vmatpush1.bf16.msra.mxu0 %v805
  %864 = vmatprep.subr.bf16.mxu0 0
  %865 = vmatpush1.bf16.msra.mxu0 %v806
  %866 = vmatprep.subr.bf16.mxu0 0
  %867 = vmatpush1.bf16.msra.mxu0 %v807
  %868 = vmatprep.subr.bf16.mxu0 0
  %869 = vmatpush1.bf16.msra.mxu0 %v808
  %870 = vmatprep.subr.bf16.mxu0 0
  %871 = vmatpush1.bf16.msra.mxu0 %v809
  %872 = vmatprep.subr.bf16.mxu0 0
  %873 = vmatpush1.bf16.msra.mxu0 %v810
  %874 = vmatprep.subr.bf16.mxu0 0
  %875 = vmatpush1.bf16.msra.mxu0 %v811
  %876 = vmatprep.mubr.bf16.mxu0 %v613
  %877 = vmatmul.mubr.bf16.gmra.mrb[0].mxu0 %v641
  %v878 = vpop.f32.mrb[0].mxu0
  %v879 = vadd.f32 %v698, %v878
  %v880 = vpop.f32.mrb[0].mxu0
  %v881 = vpop.f32.mrb[0].mxu0
  %v882 = vadd.f32 %v698, %v881
  %v883 = vpop.f32.mrb[0].mxu0
  %884 = vmatprep.mubr.bf16.mxu0 %v614
  %885 = vmatmul.mubr.bf16.gmra.mrb[0].mxu0 %v642
  %v886 = vpop.f32.mrb[0].mxu0
  %v887 = vadd.f32 %v698, %v886
  %v888 = vpop.f32.mrb[0].mxu0
  %v889 = vpop.f32.mrb[0].mxu0
  %v890 = vadd.f32 %v698, %v889
  %v891 = vpop.f32.mrb[0].mxu0
  %892 = vdwg.mxu0
  %893 = vmatprep.subr.bf16.mxu0 0
  %894 = vmatpush1.bf16.msra.mxu0 %v812
  %895 = vmatprep.subr.bf16.mxu0 0
  %896 = vmatpush1.bf16.msra.mxu0 %v813
  %897 = vmatprep.subr.bf16.mxu0 0
  %898 = vmatpush1.bf16.msra.mxu0 %v814
  %899 = vmatprep.subr.bf16.mxu0 0
  %900 = vmatpush1.bf16.msra.mxu0 %v815
  %901 = vmatprep.subr.bf16.mxu0 0
  %902 = vmatpush1.bf16.msra.mxu0 %v816
  %903 = vmatprep.subr.bf16.mxu0 0
  %904 = vmatpush1.bf16.msra.mxu0 %v817
  %905 = vmatprep.subr.bf16.mxu0 0
  %906 = vmatpush1.bf16.msra.mxu0 %v818
  %907 = vmatprep.subr.bf16.mxu0 0
  %908 = vmatpush1.bf16.msra.mxu0 %v819
  %909 = vmatprep.subr.bf16.mxu0 0
  %910 = vmatpush1.bf16.msra.mxu0 0
  %911 = vmatprep.subr.bf16.mxu0 0
  %912 = vmatpush1.bf16.msra.mxu0 0
  %913 = vmatprep.subr.bf16.mxu0 0
  %914 = vmatpush1.bf16.msra.mxu0 0
  %915 = vmatprep.subr.bf16.mxu0 0
  %916 = vmatpush1.bf16.msra.mxu0 0
  %917 = vmatprep.subr.bf16.mxu0 0
  %918 = vmatpush1.bf16.msra.mxu0 0
  %919 = vmatprep.subr.bf16.mxu0 0
  %920 = vmatpush1.bf16.msra.mxu0 0
  %921 = vmatprep.subr.bf16.mxu0 0
  %922 = vmatpush1.bf16.msra.mxu0 0
  %923 = vmatprep.subr.bf16.mxu0 0
  %924 = vmatpush1.bf16.msra.mxu0 0
  %925 = vmatprep.mubr.bf16.mxu0 0
  %926 = vmatmul.mubr.bf16.gmra.mrb[0].mxu0 %v643
  %v927 = vpop.f32.mrb[0].mxu0
  %v928 = vadd.f32 %v879, %v927
  %v929 = vpop.f32.mrb[0].mxu0
  %v930 = vpop.f32.mrb[0].mxu0
  %v931 = vadd.f32 %v882, %v930
  %v932 = vpop.f32.mrb[0].mxu0
  %933 = vmatprep.mubr.bf16.mxu0 0
  %934 = vmatmul.mubr.bf16.gmra.mrb[0].mxu0 %v644
  %v935 = vpop.f32.mrb[0].mxu0
  %v936 = vadd.f32 %v887, %v935
  %v937 = vpop.f32.mrb[0].mxu0
  %v938 = vpop.f32.mrb[0].mxu0
  %v939 = vadd.f32 %v890, %v938
  %v940 = vpop.f32.mrb[0].mxu0
  %941 = vdwg.mxu0
  %v942 = vld [vmem:[%s7] sm:$0x1]
  %v943 = vld [vmem:[%s8] sm:$0x1]
  %v944 = vadd.f32 %v928, %v931
  %v945 = vadd.f32 %v944, %v936
  %v946 = vadd.f32 %v945, %v939
  %v947 = vrot.slane %v946, 4
  %v948 = vadd.f32 %v946, %v947
  %v949 = vrot.slane %v948, 2
  %v950 = vadd.f32 %v948, %v949
  %v951 = vrot.slane %v950, 1
  %v952 = vadd.f32 %v950, %v951
  %v953 = vmul.f32 %v928, %v928
  %v954 = vmul.f32 %v931, %v931
  %v955 = vmul.f32 %v936, %v936
  %v956 = vmul.f32 %v939, %v939
  %v957 = vadd.f32 %v953, %v954
  %v958 = vadd.f32 %v957, %v955
  %v959 = vadd.f32 %v958, %v956
  %v960 = vrot.slane %v959, 4
  %v961 = vadd.f32 %v959, %v960
  %v962 = vrot.slane %v961, 2
  %v963 = vadd.f32 %v961, %v962
  %v964 = vrot.slane %v963, 1
  %v965 = vadd.f32 %v963, %v964
  %v966 = vsel %vm395, %v952, %v965
  %967 = vmatprep.subr.mxu0 0.0
  %968 = vmatpush1.msra.mxu0 %v397
  %969 = vmatprep.subr.mxu0 0.0
  %970 = vmatpush1.msra.mxu0 %v398
  %971 = vmatprep.subr.mxu0 0.0
  %972 = vmatpush1.msra.mxu0 %v399
  %973 = vmatprep.subr.mxu0 0.0
  %974 = vmatpush1.msra.mxu0 %v400
  %975 = vmatprep.subr.mxu0 0.0
  %976 = vmatpush1.msra.mxu0 %v401
  %977 = vmatprep.subr.mxu0 0.0
  %978 = vmatpush1.msra.mxu0 %v402
  %979 = vmatprep.subr.mxu0 0.0
  %980 = vmatpush1.msra.mxu0 %v403
  %981 = vmatprep.subr.mxu0 0.0
  %982 = vmatpush1.msra.mxu0 %v404
  %983 = vmatprep.subr.mxu0 0.0
  %984 = vmatpush1.msra.mxu0 %v405
  %985 = vmatprep.subr.mxu0 0.0
  %986 = vmatpush1.msra.mxu0 %v406
  %987 = vmatprep.subr.mxu0 0.0
  %988 = vmatpush1.msra.mxu0 %v407
  %989 = vmatprep.subr.mxu0 0.0
  %990 = vmatpush1.msra.mxu0 %v408
  %991 = vmatprep.subr.mxu0 0.0
  %992 = vmatpush1.msra.mxu0 %v409
  %993 = vmatprep.subr.mxu0 0.0
  %994 = vmatpush1.msra.mxu0 %v410
  %995 = vmatprep.subr.mxu0 0.0
  %996 = vmatpush1.msra.mxu0 %v411
  %997 = vmatprep.subr.mxu0 0.0
  %998 = vmatpush1.msra.mxu0 %v412
  %999 = vmatprep.subr.mxu0 0.0
  %1000 = vmatpush1.msra.mxu0 0.0
  %1001 = vmatprep.subr.mxu0 0.0
  %1002 = vmatpush1.msra.mxu0 0.0
  %1003 = vmatprep.subr.mxu0 0.0
  %1004 = vmatpush1.msra.mxu0 0.0
  %1005 = vmatprep.subr.mxu0 0.0
  %1006 = vmatpush1.msra.mxu0 0.0
  %1007 = vmatprep.subr.mxu0 0.0
  %1008 = vmatpush1.msra.mxu0 0.0
  %1009 = vmatprep.subr.mxu0 0.0
  %1010 = vmatpush1.msra.mxu0 0.0
  %1011 = vmatprep.subr.mxu0 0.0
  %1012 = vmatpush1.msra.mxu0 0.0
  %1013 = vmatprep.subr.mxu0 0.0
  %1014 = vmatpush1.msra.mxu0 0.0
  %1015 = vmatprep.subr.mxu0 0.0
  %1016 = vmatpush1.msra.mxu0 0.0
  %1017 = vmatprep.subr.mxu0 0.0
  %1018 = vmatpush1.msra.mxu0 0.0
  %1019 = vmatprep.subr.mxu0 0.0
  %1020 = vmatpush1.msra.mxu0 0.0
  %1021 = vmatprep.subr.mxu0 0.0
  %1022 = vmatpush1.msra.mxu0 0.0
  %1023 = vmatprep.subr.mxu0 0.0
  %1024 = vmatpush1.msra.mxu0 0.0
  %1025 = vmatprep.subr.mxu0 0.0
  %1026 = vmatpush1.msra.mxu0 0.0
  %1027 = vmatprep.subr.mxu0 0.0
  %1028 = vmatpush1.msra.mxu0 0.0
  %1029 = vmatprep.subr.mxu0 0.0
  %1030 = vmatpush1.msra.mxu0 0.0
  %1031 = vmatprep.mubr.f32.mxu0 0.0
  %1032 = vmatmul.mubr.f32.gmra.mrb[0].mxu0 %v966
  %v1033 = vpop.f32.mrb[0].mxu0
  %v1034 = vadd.f32 0.0, %v1033
  %v1035 = vpop.f32.mrb[0].mxu0
  %1036 = vdwg.mxu0
  %v1037 = vmul.f32 %v1034, 0.001953125
  %v1038 = vmul.f32 %v1037, %v1037
  %v1040 = vrot.slane %v1038, 7
  %v1042 = vsub.f32 %v1037, %v1040
  %v1043 = vadd.f32 %v1042, 1e-05
  %v1044 = vrsqrt.pop %v1043
  %v1047 = vunpack.c.l.s4 1966171168
  %v1048 = vunpack.c.0.s8 %v1047
  %v1049 = vlaneseq
  %v1050 = vshrl.u32 %v1049, 7
  %v1051 = vsub.s32 %v1048, %v1050
  %v1052 = vrot.slane %v1044, %v1051
  %v1053 = vcombine.high %v1052, %v1052
  %v1055 = vunpack.c.l.s4 1966171168
  %v1056 = vunpack.c.0.s8 %v1055
  %v1057 = vlaneseq
  %v1058 = vshrl.u32 %v1057, 7
  %v1059 = vsub.s32 %v1056, %v1058
  %v1060 = vrot.slane %v1053, %v1059
  %v1062 = vmul.f32 %v942, %v1060
  %v1063 = vmul.f32 %v1037, %v1062
  %v1064 = vsub.f32 %v943, %v1063
  %v1066 = vlaneseq
  %v1067 = vshrl.u32 %v1066, 7
  %v1068 = vsub.s32 0, %v1067
  %v1069 = vrot.slane %v1064, %v1068
  %v1071 = vsel %vm395, %v1062, %v1069
  %v1073 = vsel %vm519, %v1071, 0
  %1075 = vmatprep.subr.mxu0 0.0
  %1076 = vmatpush1.msra.mxu0 %v518
  %1077 = vmatprep.subr.mxu0 0.0
  %1078 = vmatpush1.msra.mxu0 0.0
  %1079 = vmatprep.subr.mxu0 0.0
  %1080 = vmatpush1.msra.mxu0 0.0
  %1081 = vmatprep.subr.mxu0 0.0
  %1082 = vmatpush1.msra.mxu0 0.0
  %1083 = vmatprep.subr.mxu0 0.0
  %1084 = vmatpush1.msra.mxu0 0.0
  %1085 = vmatprep.subr.mxu0 0.0
  %1086 = vmatpush1.msra.mxu0 0.0
  %1087 = vmatprep.subr.mxu0 0.0
  %1088 = vmatpush1.msra.mxu0 0.0
  %1089 = vmatprep.subr.mxu0 0.0
  %1090 = vmatpush1.msra.mxu0 0.0
  %1091 = vmatprep.subr.mxu0 0.0
  %1092 = vmatpush1.msra.mxu0 0.0
  %1093 = vmatprep.subr.mxu0 0.0
  %1094 = vmatpush1.msra.mxu0 0.0
  %1095 = vmatprep.subr.mxu0 0.0
  %1096 = vmatpush1.msra.mxu0 0.0
  %1097 = vmatprep.subr.mxu0 0.0
  %1098 = vmatpush1.msra.mxu0 0.0
  %1099 = vmatprep.subr.mxu0 0.0
  %1100 = vmatpush1.msra.mxu0 0.0
  %1101 = vmatprep.subr.mxu0 0.0
  %1102 = vmatpush1.msra.mxu0 0.0
  %1103 = vmatprep.subr.mxu0 0.0
  %1104 = vmatpush1.msra.mxu0 0.0
  %1105 = vmatprep.subr.mxu0 0.0
  %1106 = vmatpush1.msra.mxu0 0.0
  %1107 = vmatprep.subr.mxu0 0.0
  %1108 = vmatpush1.msra.mxu0 0.0
  %1109 = vmatprep.subr.mxu0 0.0
  %1110 = vmatpush1.msra.mxu0 0.0
  %1111 = vmatprep.subr.mxu0 0.0
  %1112 = vmatpush1.msra.mxu0 0.0
  %1113 = vmatprep.subr.mxu0 0.0
  %1114 = vmatpush1.msra.mxu0 0.0
  %1115 = vmatprep.subr.mxu0 0.0
  %1116 = vmatpush1.msra.mxu0 0.0
  %1117 = vmatprep.subr.mxu0 0.0
  %1118 = vmatpush1.msra.mxu0 0.0
  %1119 = vmatprep.subr.mxu0 0.0
  %1120 = vmatpush1.msra.mxu0 0.0
  %1121 = vmatprep.subr.mxu0 0.0
  %1122 = vmatpush1.msra.mxu0 0.0
  %1123 = vmatprep.subr.mxu0 0.0
  %1124 = vmatpush1.msra.mxu0 0.0
  %1125 = vmatprep.subr.mxu0 0.0
  %1126 = vmatpush1.msra.mxu0 0.0
  %1127 = vmatprep.subr.mxu0 0.0
  %1128 = vmatpush1.msra.mxu0 0.0
  %1129 = vmatprep.subr.mxu0 0.0
  %1130 = vmatpush1.msra.mxu0 0.0
  %1131 = vmatprep.subr.mxu0 0.0
  %1132 = vmatpush1.msra.mxu0 0.0
  %1133 = vmatprep.subr.mxu0 0.0
  %1134 = vmatpush1.msra.mxu0 0.0
  %1135 = vmatprep.subr.mxu0 0.0
  %1136 = vmatpush1.msra.mxu0 0.0
  %1137 = vmatprep.subr.mxu0 0.0
  %1138 = vmatpush1.msra.mxu0 0.0
  %1139 = vmatprep.mubr.f32.mxu0 0.0
  %1140 = vmatmul.mubr.f32.gmra.mrb[0].mxu0 %v1073
  %v1141 = vpop.f32.mrb[0].mxu0
  %v1142 = vadd.f32 0.0, %v1141
  %v1143 = vpop.f32.mrb[0].mxu0
  %1144 = vdwg.mxu0
  %v1145 = vlaneseq
  %v1146 = vshrl.u32 %v1145, 7
  %v1147 = vsub.s32 0, %v1146
  %v1148 = vrot.slane %v1142, %v1147
  %v1149 = vmul.f32 %v928, %v1148
  %v1150 = vmul.f32 %v931, %v1148
  %v1151 = vmul.f32 %v936, %v1148
  %v1152 = vmul.f32 %v939, %v1148
  %v1153 = vlaneseq
  %v1154 = vshrl.u32 %v1153, 7
  %v1155 = vsub.s32 1, %v1154
  %v1156 = vrot.slane %v1142, %v1155
  %v1157 = vadd.f32 %v1149, %v1156
  %v1158 = vadd.f32 %v1150, %v1156
  %v1159 = vadd.f32 %v1151, %v1156
  %v1160 = vadd.f32 %v1152, %v1156
  %v1161 = vmax.f32 %v1157, 0.0
  %v1162 = vmax.f32 %v1158, 0.0
  %v1163 = vmax.f32 %v1159, 0.0
  %v1164 = vmax.f32 %v1160, 0.0
  %1165 = vst [vmem:[%s11] sm:$0xff] %v1161
  %1166 = vst [vmem:[%s11 + $0x8] sm:$0xff] %v1162
  %1167 = vst [vmem:[%s11 + $0x10] sm:$0xff] %v1163
  %1168 = vst [vmem:[%s11 + $0x18] sm:$0xff] %v1164
  // Predicated region
  $region46: #{double_conv_pallas.1} parent=0 // pred_check
    _
  $region47: #{double_conv_pallas.1} parent=0 // pred_check_branch
    %1170 = sbr.rel (0) target = $region49
  $region48: #{double_conv_pallas.1} parent=0 // pred_region
    _
  $region49: #{double_conv_pallas.1} parent=0 // pred_fallthru
    _
  // Predicated region
  $region50: #{double_conv_pallas.1} parent=0 // pred_check
    _
  $region51: #{double_conv_pallas.1} parent=0 // pred_check_branch
    %1172 = sbr.rel (0) target = $region53
  $region52: #{double_conv_pallas.1} parent=0 // pred_region
    _
  $region53: #{double_conv_pallas.1} parent=0 // pred_fallthru
    _

</llo_original>
